<compile_context>
chip_gen: v6e
topology: v6e:2x2x1
jax: 0.10.0
libtpu: 0.0.40
codegen_flags: <defaults>
</compile_context>

<pallas_src>
import functools
from typing import NamedTuple

import jax
import jax.numpy as jnp
from jax.experimental import pallas as pl
from jax.experimental.pallas import tpu as pltpu

BN_EPS = 1e-5
NORM_EPS = 1e-12
LANE = 128
SUBLANE_BF16 = 16
MATMUL_DTYPE = jnp.bfloat16   # MXU-native operand dtype; f32 accumulation kept.


def _round_up(n, m):
    return (n + m - 1) // m * m


def _bn_train(h, gamma, beta, *, inv_n=None, row_mask=None, eps=BN_EPS):
    """Training-mode BatchNorm1d (biased stats), fused one-pass stats + single FMA apply.

    `inv_n` lets the caller divide by the *real* batch size when `h` carries zero-padded
    rows; `row_mask` re-zeroes those rows after the affine apply so they stay exactly
    zero for the next layer's statistics.
    """
    if inv_n is None:
        inv_n = 1.0 / h.shape[0]
    s = jnp.sum(h, axis=0, keepdims=True)
    ss = jnp.sum(h * h, axis=0, keepdims=True)
    mean = s * inv_n
    var = jnp.maximum(ss * inv_n - mean * mean, 0.0)   # guard one-pass cancellation
    scale = gamma * jax.lax.rsqrt(var + eps)
    shift = beta - mean * scale
    out = h * scale + shift
    if row_mask is not None:
        out = out * row_mask
    return out


def embed_head_kernel(x_ref,    # (B_pad, TK)       bf16, K-tile of (batch-padded) input
                      w1_ref,   # (TK, L_pad)       bf16, K-tile of W1
                      g1_ref,   # (1, L_pad)        f32  BN1 gamma (0 in padded cols)
                      be1_ref,  # (1, L_pad)        f32  BN1 beta
                      w2_ref,   # (L_pad, L_pad)    bf16
                      w3_ref,   # (L_pad, 512)      bf16
                      bf_ref,   # (1, 512)          f32  features-BN bias (weight frozen to 1)
                      o_ref,    # (B_pad, 512)      f32
                      acc_ref,  # (B_pad, L_pad)    f32 scratch accumulator
                      hbf_ref,  # (B_pad, L_pad)    bf16 scratch (layer-2/3 operand)
                      *, b_actual):
    k = pl.program_id(0)

    @pl.when(k == 0)
    def _init():
        acc_ref[...] = jnp.zeros_like(acc_ref)

    # Layer-1 matmul streamed over K tiles (bf16 operands, f32 MXU accumulation).
    acc_ref[...] += jnp.dot(x_ref[...], w1_ref[...],
                            preferred_element_type=jnp.float32)

    @pl.when(k == pl.num_programs(0) - 1)
    def _epilogue():
        b_pad = acc_ref.shape[0]
        inv_n = 1.0 / b_actual
        if b_pad != b_actual:   # static branch: mask keeps zero-padded batch rows at 0
            rows = jax.lax.broadcasted_iota(jnp.int32, (b_pad, 1), 0)
            row_mask = (rows < b_actual).astype(jnp.float32)
        else:
            row_mask = None

        # ---- BN1 (affine) + ReLU -> bf16 operand staged in VMEM scratch --------
        h = _bn_train(acc_ref[...], g1_ref[...], be1_ref[...],
                      inv_n=inv_n, row_mask=row_mask)
        hbf_ref[...] = jnp.maximum(h, 0.0).astype(hbf_ref.dtype)

        # ---- Linear 2 + BN (no affine) + ReLU -----------------------------------
        h = jnp.dot(hbf_ref[...], w2_ref[...], preferred_element_type=jnp.float32)
        h = _bn_train(h, 1.0, 0.0, inv_n=inv_n, row_mask=row_mask)
        hbf_ref[...] = jnp.maximum(h, 0.0).astype(hbf_ref.dtype)

        # ---- Linear 3 (-> 512) + features BN (weight frozen to 1.0) -------------
        h = jnp.dot(hbf_ref[...], w3_ref[...], preferred_element_type=jnp.float32)
        h = _bn_train(h, 1.0, bf_ref[...], inv_n=inv_n)

        # ---- F.normalize(p=2, dim=1): 1/max(||h||,eps) == rsqrt(max(sumsq,eps^2))
        sumsq = jnp.sum(h * h, axis=1, keepdims=True)
        inv = jax.lax.rsqrt(jnp.maximum(sumsq, NORM_EPS * NORM_EPS))
        o_ref[...] = (h * inv).astype(o_ref.dtype)


# --------------------------- generation-aware sizing -------------------------------

def _vmem_capacity_bytes():
    try:
        info = pltpu.get_tpu_info()
        for attr in ("vmem_capacity_bytes", "vmem_size_bytes", "vmem_bytes"):
            v = getattr(info, attr, None)
            if v:
                return int(v)
    except Exception:
        pass
    return None


def _select_budget():
    """Return (vmem_limit_bytes, tk_cap) for the current TPU generation."""
    cap = _vmem_capacity_bytes()
    if cap is None:
        return 32 << 20, 4096                       # unknown part: conservative default
    if cap >= (96 << 20):                           # v5e / v6e: 128 MiB physical VMEM
        return 100 << 20, 8192
    # v7x (64 MiB per TC) or smaller: leave compiler headroom; enforce via TK choice.
    return max(cap - (12 << 20), 16 << 20), 4096


def _vmem_footprint(b_pad, tk, l_pad, out):
    bf2, f4 = 2, 4
    streamed = 2 * (b_pad * tk + tk * l_pad) * bf2      # double-buffered x / W1 tiles
    consts = 2 * (l_pad * l_pad + l_pad * out) * bf2    # W2/W3 (worst case double-buffered)
    consts += 2 * (2 * l_pad + out) * f4                # BN params
    scratch = b_pad * l_pad * (f4 + bf2)                # f32 acc + bf16 h scratch
    outbuf = 2 * b_pad * out * f4
    epilogue = 4 * b_pad * max(l_pad, out) * f4         # live f32 temporaries
    return streamed + consts + scratch + outbuf + epilogue


# --------------------------- one-time parameter prep -------------------------------

class PreppedParams(NamedTuple):
    w1: jax.Array      # (k_pad, l_pad) bf16
    g1: jax.Array      # (1, l_pad)     f32
    be1: jax.Array     # (1, l_pad)     f32
    w2: jax.Array      # (l_pad, l_pad) bf16
    w3: jax.Array      # (l_pad, out)   bf16
    bf: jax.Array      # (1, out)       f32
    k: int
    k_pad: int
    l_pad: int
    out: int
    tk: int
    max_b_pad: int
    vmem_limit: int


def prepare_params(params, *, max_batch=256, tk_override=None):
    """One-time weight prep (pad + bf16 cast) hoisted out of the per-call path."""
    w1, b1, g1, be1, w2, b2, w3, b3, bf = params
    del b1, b2, b3   # Linear biases are exactly cancelled by training-mode BN mean-sub.

    k, l = w1.shape
    out = w3.shape[1]
    assert out % LANE == 0
    # Lane-dense padding; realistic latent (512) is already a multiple of 256 for the MXU.
    l_pad = _round_up(l, LANE)
    max_b_pad = _round_up(max(max_batch, 1), SUBLANE_BF16)

    vmem_limit, tk_cap = _select_budget()
    tk = _round_up(min(_round_up(k, LANE),
                       tk_cap if tk_override is None else tk_override), LANE)
    while _vmem_footprint(max_b_pad, tk, l_pad, out) > vmem_limit and tk > LANE:
        tk = max(LANE, tk // 2)        # budget enforced by TK, not by under-declaring it
    k_pad = _round_up(k, tk)

    w1p = jnp.pad(w1, ((0, k_pad - k), (0, l_pad - l))).astype(MATMUL_DTYPE)
    w2p = jnp.pad(w2, ((0, l_pad - l), (0, l_pad - l))).astype(MATMUL_DTYPE)
    w3p = jnp.pad(w3, ((0, l_pad - l), (0, 0))).astype(MATMUL_DTYPE)
    g1p = jnp.pad(g1.astype(jnp.float32), ((0, 0), (0, l_pad - l)))   # gamma=0 in pad cols
    be1p = jnp.pad(be1.astype(jnp.float32), ((0, 0), (0, l_pad - l)))
    bfp = bf.astype(jnp.float32)

    return PreppedParams(w1p, g1p, be1p, w2p, w3p, bfp,
                         int(k), int(k_pad), int(l_pad), int(out),
                         int(tk), int(max_b_pad), int(vmem_limit))


# ----------------------------------- forward ---------------------------------------

def embed_head_forward(x, prepped: PreppedParams):
    b, k = x.shape
    assert k == prepped.k
    b_pad = _round_up(max(b, 1), SUBLANE_BF16)   # bf16 sublane packing
    assert b_pad <= prepped.max_b_pad, "re-run prepare_params with a larger max_batch"

    # Single cast (no f32 round trip); zero pad rows/cols are exact through every layer.
    xp = jnp.pad(x.astype(MATMUL_DTYPE), ((0, b_pad - b), (0, prepped.k_pad - k)))

    tk, l_pad, out = prepped.tk, prepped.l_pad, prepped.out
    nk = prepped.k_pad // tk

    flops = 2 * b_pad * (prepped.k_pad * l_pad + l_pad * l_pad + l_pad * out)
    bytes_accessed = ((xp.size + prepped.w1.size + prepped.w2.size + prepped.w3.size) * 2
                      + (prepped.g1.size + prepped.be1.size + prepped.bf.size) * 4
                      + b_pad * out * 4)
    cost = pl.CostEstimate(flops=int(flops),
                           transcendentals=int(b_pad + 2 * l_pad + out),
                           bytes_accessed=int(bytes_accessed))

    kernel = functools.partial(embed_head_kernel, b_actual=b)

    def run(single_buffer_constants):
        def const_spec(shape):
            idx = lambda k_, _s=shape: (0,) * len(_s)
            if single_buffer_constants:
                # Grid-invariant blocks don't need a second pipeline buffer.
                return pl.BlockSpec(shape, idx, pipeline_mode=pl.Buffered(1))
            return pl.BlockSpec(shape, idx)

        in_specs = [
            # K-streamed x / W1 tiles: keep the DEFAULT double buffer (pipeline is
            # bandwidth-limited; deeper buffering only burns VMEM).
            pl.BlockSpec((b_pad, tk), lambda k_: (0, k_)),
            pl.BlockSpec((tk, l_pad), lambda k_: (k_, 0)),
            const_spec((1, l_pad)),
            const_spec((1, l_pad)),
            const_spec((l_pad, l_pad)),
            const_spec((l_pad, out)),
            const_spec((1, out)),
        ]
        return pl.pallas_call(
            kernel,
            out_shape=jax.ShapeDtypeStruct((b_pad, out), jnp.float32),
            grid_spec=pltpu.PrefetchScalarGridSpec(
                num_scalar_prefetch=0,
                grid=(nk,),
                in_specs=in_specs,
                out_specs=pl.BlockSpec((b_pad, out), lambda k_: (0, 0)),
                scratch_shapes=[pltpu.VMEM((b_pad, l_pad), jnp.float32),
                                pltpu.VMEM((b_pad, l_pad), MATMUL_DTYPE)],
            ),
            compiler_params=pltpu.CompilerParams(
                dimension_semantics=("arbitrary",),   # K axis carries the accumulator
                vmem_limit_bytes=prepped.vmem_limit,
            ),
            cost_estimate=cost,
        )(xp, prepped.w1, prepped.g1, prepped.be1, prepped.w2, prepped.w3, prepped.bf)

    try:
        out_pad = run(single_buffer_constants=True)
    except Exception:
        # pipeline_mode=pl.Buffered(1) not supported on this jax/mosaic version.
        out_pad = run(single_buffer_constants=False)

    return out_pad[:b]


# --------------------------- params / pure-JAX reference ---------------------------

def init_params(key, convf_dim, latent):
    ks = jax.random.split(key, 6)

    def lin_init(kw, kb, fan_in, fan_out):
        bound = 1.0 / (fan_in ** 0.5)
        w = jax.random.uniform(kw, (fan_in, fan_out), jnp.float32, -bound, bound)
        b = jax.random.uniform(kb, (1, fan_out), jnp.float32, -bound, bound)
        return w, b

    w1, b1 = lin_init(ks[0], ks[1], convf_dim, latent)
    w2, b2 = lin_init(ks[2], ks[3], latent, latent)
    w3, b3 = lin_init(ks[4], ks[5], latent, 512)

    g1 = jnp.ones((1, latent), jnp.float32)      # BN1 weight
    be1 = jnp.zeros((1, latent), jnp.float32)    # BN1 bias
    bf = jnp.zeros((1, 512), jnp.float32)        # features-BN bias (weight fixed to 1.0)
    return (w1, b1, g1, be1, w2, b2, w3, b3, bf)


def reference_forward(x, params, *, matmul_dtype=MATMUL_DTYPE, with_bias=True):
    """Pure-JAX reference.  with_bias=True follows the PyTorch module exactly
    (Linear biases included); training-mode BN cancels them, so it must match
    the bias-free kernel up to rounding."""
    w1, b1, g1, be1, w2, b2, w3, b3, bf = params

    def mm(a, w):
        return jnp.dot(a.astype(matmul_dtype), w.astype(matmul_dtype),
                       preferred_element_type=jnp.float32)

    def add_bias(h, b_):
        return h + b_ if with_bias else h

    h = add_bias(mm(x, w1), b1)
    h = jnp.maximum(_bn_train(h, g1, be1), 0.0)
    h = add_bias(mm(h, w2), b2)
    h = jnp.maximum(_bn_train(h, 1.0, 0.0), 0.0)
    h = add_bias(mm(h, w3), b3)
    h = _bn_train(h, 1.0, bf)
    norm = jnp.sqrt(jnp.sum(h * h, axis=1, keepdims=True))
    return h / jnp.maximum(norm, NORM_EPS)


if __name__ == "__main__":
    # Small shapes; B deliberately not a multiple of 16 and convf_dim not a multiple of
    # the K tile so the batch-pad/row-mask and K-accumulation paths are both exercised.
    B, CONVF_DIM, LATENT = 6, 200, 48

    key = jax.random.PRNGKey(0)
    kx, kp = jax.random.split(key)
    x = jax.random.normal(kx, (B, CONVF_DIM), jnp.float32)
    params = init_params(kp, CONVF_DIM, LATENT)

    # One-time weight prep (pad + bf16 cast) hoisted out of the per-call path.
    prepped = prepare_params(params, max_batch=16, tk_override=128)   # -> 2 K tiles

    out = jax.block_until_ready(embed_head_forward(x, prepped))
    assert out.shape == (B, 512)

    # Tight check: reference with the SAME bf16-operand / f32-accumulate matmuls and the
    # full PyTorch semantics (Linear biases included -> validates bias cancellation and
    # the batch-pad / row-mask BN statistics).
    ref_bf16 = reference_forward(x, params)
    assert jnp.allclose(out, ref_bf16, atol=5e-4, rtol=1e-2), \
        float(jnp.max(jnp.abs(out - ref_bf16)))

    # Loose sanity check against the exact full-f32 module semantics.
    ref_f32 = reference_forward(x, params, matmul_dtype=jnp.float32)
    assert jnp.allclose(out, ref_f32, atol=2e-2), \
        float(jnp.max(jnp.abs(out - ref_f32)))

    print("KERNEL_OK")
</pallas_src>

<mosaic_0001>
module attributes {stable_mosaic.version = 11 : i64} {
  func.func @embed_head_kernel(%arg0: i32, %arg1: memref<16x128xbf16, #tpu.memory_space<vmem>>, %arg2: memref<128x128xbf16, #tpu.memory_space<vmem>>, %arg3: memref<1x128xf32, #tpu.memory_space<vmem>>, %arg4: memref<1x128xf32, #tpu.memory_space<vmem>>, %arg5: memref<128x128xbf16, #tpu.memory_space<vmem>>, %arg6: memref<128x512xbf16, #tpu.memory_space<vmem>>, %arg7: memref<1x512xf32, #tpu.memory_space<vmem>>, %arg8: memref<16x512xf32, #tpu.memory_space<vmem>>, %arg9: memref<16x128xf32, #tpu.memory_space<vmem>>, %arg10: memref<16x128xbf16, #tpu.memory_space<vmem>>) attributes {dimension_semantics = [#tpu.dimension_semantics<arbitrary>], iteration_bounds = array<i64: 2>, scalar_prefetch = 0 : i64, scratch_operands = 2 : i64, tpu.core_type = #tpu.core_type<tc>, window_params = [{transform_indices = @transform_0, window_bounds = array<i64: 16, 128>}, {transform_indices = @transform_1, window_bounds = array<i64: 128, 128>}, {pipeline_mode = #tpu.pipeline_mode<synchronous>, transform_indices = @transform_2, window_bounds = array<i64: 1, 128>}, {pipeline_mode = #tpu.pipeline_mode<synchronous>, transform_indices = @transform_3, window_bounds = array<i64: 1, 128>}, {pipeline_mode = #tpu.pipeline_mode<synchronous>, transform_indices = @transform_4, window_bounds = array<i64: 128, 128>}, {pipeline_mode = #tpu.pipeline_mode<synchronous>, transform_indices = @transform_5, window_bounds = array<i64: 128, 512>}, {pipeline_mode = #tpu.pipeline_mode<synchronous>, transform_indices = @transform_6, window_bounds = array<i64: 1, 512>}, {pipeline_mode = #tpu.pipeline_mode<synchronous>, transform_indices = @transform_7, window_bounds = array<i64: 16, 512>}]} {
    %c0_i32 = arith.constant 0 : i32
    %0 = arith.cmpi eq, %arg0, %c0_i32 : i32
    %1 = arith.extui %0 : i1 to i32
    %c0_i32_0 = arith.constant 0 : i32
    %2 = arith.cmpi ne, %1, %c0_i32_0 : i32
    scf.if %2 {
      %cst_9 = arith.constant 0.000000e+00 : f32
      %12 = vector.broadcast %cst_9 : f32 to vector<16x128xf32>
      %c0_10 = arith.constant 0 : index
      %c0_11 = arith.constant 0 : index
      %13 = vector.load %arg9[%c0_10, %c0_11] : memref<16x128xf32, #tpu.memory_space<vmem>>, vector<16x128xf32>
      tpu.vector_store %arg9[%c0_10, %c0_11], %12 {strides = array<i32>} : memref<16x128xf32, #tpu.memory_space<vmem>>, vector<16x128xf32>,
    } else {
    }
    %c0 = arith.constant 0 : index
    %c0_1 = arith.constant 0 : index
    %3 = vector.load %arg9[%c0, %c0_1] : memref<16x128xf32, #tpu.memory_space<vmem>>, vector<16x128xf32>
    %c0_2 = arith.constant 0 : index
    %c0_3 = arith.constant 0 : index
    %4 = vector.load %arg1[%c0_2, %c0_3] : memref<16x128xbf16, #tpu.memory_space<vmem>>, vector<16x128xbf16>
    %c0_4 = arith.constant 0 : index
    %c0_5 = arith.constant 0 : index
    %5 = vector.load %arg2[%c0_4, %c0_5] : memref<128x128xbf16, #tpu.memory_space<vmem>>, vector<128x128xbf16>
    %cst = arith.constant dense<0.000000e+00> : vector<16x128xf32>
    %6 = tpu.matmul %4, %5, %cst {dimension_numbers = #tpu.dot_dimension_numbers<[1], [0], [0], [1], [0, 0, 1, 1], [], []>} : vector<16x128xbf16>, vector<128x128xbf16>, vector<16x128xf32> -> vector<16x128xf32>
    %7 = arith.addf %3, %6 : vector<16x128xf32>
    %c0_6 = arith.constant 0 : index
    %c0_7 = arith.constant 0 : index
    %8 = vector.load %arg9[%c0_6, %c0_7] : memref<16x128xf32, #tpu.memory_space<vmem>>, vector<16x128xf32>
    tpu.vector_store %arg9[%c0_6, %c0_7], %7 {strides = array<i32>} : memref<16x128xf32, #tpu.memory_space<vmem>>, vector<16x128xf32>,
    %c1_i32 = arith.constant 1 : i32
    %9 = arith.cmpi eq, %arg0, %c1_i32 : i32
    %10 = arith.extui %9 : i1 to i32
    %c0_i32_8 = arith.constant 0 : i32
    %11 = arith.cmpi ne, %10, %c0_i32_8 : i32
    scf.if %11 {
      %12 = tpu.iota {dimensions = array<i32: 0>} : vector<16x1xi32>
      %c6_i32 = arith.constant 6 : i32
      %13 = vector.broadcast %c6_i32 : i32 to vector<16x1xi32>
      %14 = arith.cmpi slt, %12, %13 : vector<16x1xi32>
      %15 = arith.extui %14 : vector<16x1xi1> to vector<16x1xi32>
      %16 = arith.sitofp %15 : vector<16x1xi32> to vector<16x1xf32>
      %c0_9 = arith.constant 0 : index
      %c0_10 = arith.constant 0 : index
      %17 = vector.load %arg9[%c0_9, %c0_10] : memref<16x128xf32, #tpu.memory_space<vmem>>, vector<16x128xf32>
      %c0_11 = arith.constant 0 : index
      %c0_12 = arith.constant 0 : index
      %18 = vector.load %arg3[%c0_11, %c0_12] : memref<1x128xf32, #tpu.memory_space<vmem>>, vector<1x128xf32>
      %c0_13 = arith.constant 0 : index
      %c0_14 = arith.constant 0 : index
      %19 = vector.load %arg4[%c0_13, %c0_14] : memref<1x128xf32, #tpu.memory_space<vmem>>, vector<1x128xf32>
      %cst_15 = arith.constant dense<0.000000e+00> : vector<128xf32>
      %20 = vector.multi_reduction <add>, %17, %cst_15 [0] : vector<16x128xf32> to vector<128xf32>
      %21 = vector.shape_cast %20 : vector<128xf32> to vector<1x128xf32>
      %22 = arith.mulf %17, %17 : vector<16x128xf32>
      %cst_16 = arith.constant dense<0.000000e+00> : vector<128xf32>
      %23 = vector.multi_reduction <add>, %22, %cst_16 [0] : vector<16x128xf32> to vector<128xf32>
      %24 = vector.shape_cast %23 : vector<128xf32> to vector<1x128xf32>
      %cst_17 = arith.constant 0.166666672 : f32
      %25 = vector.broadcast %cst_17 : f32 to vector<1x128xf32>
      %26 = arith.mulf %21, %25 : vector<1x128xf32>
      %cst_18 = arith.constant 0.166666672 : f32
      %27 = vector.broadcast %cst_18 : f32 to vector<1x128xf32>
      %28 = arith.mulf %24, %27 : vector<1x128xf32>
      %29 = arith.mulf %26, %26 : vector<1x128xf32>
      %30 = arith.subf %28, %29 : vector<1x128xf32>
      %cst_19 = arith.constant 0.000000e+00 : f32
      %31 = vector.broadcast %cst_19 : f32 to vector<1x128xf32>
      %32 = arith.maximumf %30, %31 : vector<1x128xf32>
      %cst_20 = arith.constant 9.99999974E-6 : f32
      %33 = vector.broadcast %cst_20 : f32 to vector<1x128xf32>
      %34 = arith.addf %32, %33 : vector<1x128xf32>
      %35 = math.rsqrt %34 : vector<1x128xf32>
      %36 = arith.mulf %18, %35 : vector<1x128xf32>
      %37 = arith.mulf %26, %36 : vector<1x128xf32>
      %38 = arith.subf %19, %37 : vector<1x128xf32>
      %39 = vector.broadcast %36 : vector<1x128xf32> to vector<16x128xf32>
      %40 = arith.mulf %17, %39 : vector<16x128xf32>
      %41 = vector.broadcast %38 : vector<1x128xf32> to vector<16x128xf32>
      %42 = arith.addf %40, %41 : vector<16x128xf32>
      %43 = vector.broadcast %16 : vector<16x1xf32> to vector<16x128xf32>
      %44 = arith.mulf %42, %43 : vector<16x128xf32>
      %cst_21 = arith.constant 0.000000e+00 : f32
      %45 = vector.broadcast %cst_21 : f32 to vector<16x128xf32>
      %46 = arith.maximumf %44, %45 : vector<16x128xf32>
      %47 = arith.truncf %46 : vector<16x128xf32> to vector<16x128xbf16>
      %c0_22 = arith.constant 0 : index
      %c0_23 = arith.constant 0 : index
      %48 = vector.load %arg10[%c0_22, %c0_23] : memref<16x128xbf16, #tpu.memory_space<vmem>>, vector<16x128xbf16>
      tpu.vector_store %arg10[%c0_22, %c0_23], %47 {strides = array<i32>} : memref<16x128xbf16, #tpu.memory_space<vmem>>, vector<16x128xbf16>,
      %c0_24 = arith.constant 0 : index
      %c0_25 = arith.constant 0 : index
      %49 = vector.load %arg10[%c0_24, %c0_25] : memref<16x128xbf16, #tpu.memory_space<vmem>>, vector<16x128xbf16>
      %c0_26 = arith.constant 0 : index
      %c0_27 = arith.constant 0 : index
      %50 = vector.load %arg5[%c0_26, %c0_27] : memref<128x128xbf16, #tpu.memory_space<vmem>>, vector<128x128xbf16>
      %cst_28 = arith.constant dense<0.000000e+00> : vector<16x128xf32>
      %51 = tpu.matmul %49, %50, %cst_28 {dimension_numbers = #tpu.dot_dimension_numbers<[1], [0], [0], [1], [0, 0, 1, 1], [], []>} : vector<16x128xbf16>, vector<128x128xbf16>, vector<16x128xf32> -> vector<16x128xf32>
      %cst_29 = arith.constant dense<0.000000e+00> : vector<128xf32>
      %52 = vector.multi_reduction <add>, %51, %cst_29 [0] : vector<16x128xf32> to vector<128xf32>
      %53 = vector.shape_cast %52 : vector<128xf32> to vector<1x128xf32>
      %54 = arith.mulf %51, %51 : vector<16x128xf32>
      %cst_30 = arith.constant dense<0.000000e+00> : vector<128xf32>
      %55 = vector.multi_reduction <add>, %54, %cst_30 [0] : vector<16x128xf32> to vector<128xf32>
      %56 = vector.shape_cast %55 : vector<128xf32> to vector<1x128xf32>
      %cst_31 = arith.constant 0.166666672 : f32
      %57 = vector.broadcast %cst_31 : f32 to vector<1x128xf32>
      %58 = arith.mulf %53, %57 : vector<1x128xf32>
      %cst_32 = arith.constant 0.166666672 : f32
      %59 = vector.broadcast %cst_32 : f32 to vector<1x128xf32>
      %60 = arith.mulf %56, %59 : vector<1x128xf32>
      %61 = arith.mulf %58, %58 : vector<1x128xf32>
      %62 = arith.subf %60, %61 : vector<1x128xf32>
      %cst_33 = arith.constant 0.000000e+00 : f32
      %63 = vector.broadcast %cst_33 : f32 to vector<1x128xf32>
      %64 = arith.maximumf %62, %63 : vector<1x128xf32>
      %cst_34 = arith.constant 9.99999974E-6 : f32
      %65 = vector.broadcast %cst_34 : f32 to vector<1x128xf32>
      %66 = arith.addf %64, %65 : vector<1x128xf32>
      %67 = math.rsqrt %66 : vector<1x128xf32>
      %cst_35 = arith.constant 1.000000e+00 : f32
      %68 = vector.broadcast %cst_35 : f32 to vector<1x128xf32>
      %69 = arith.mulf %68, %67 : vector<1x128xf32>
      %70 = arith.mulf %58, %69 : vector<1x128xf32>
      %cst_36 = arith.constant 0.000000e+00 : f32
      %71 = vector.broadcast %cst_36 : f32 to vector<1x128xf32>
      %72 = arith.subf %71, %70 : vector<1x128xf32>
      %73 = vector.broadcast %69 : vector<1x128xf32> to vector<16x128xf32>
      %74 = arith.mulf %51, %73 : vector<16x128xf32>
      %75 = vector.broadcast %72 : vector<1x128xf32> to vector<16x128xf32>
      %76 = arith.addf %74, %75 : vector<16x128xf32>
      %77 = vector.broadcast %16 : vector<16x1xf32> to vector<16x128xf32>
      %78 = arith.mulf %76, %77 : vector<16x128xf32>
      %cst_37 = arith.constant 0.000000e+00 : f32
      %79 = vector.broadcast %cst_37 : f32 to vector<16x128xf32>
      %80 = arith.maximumf %78, %79 : vector<16x128xf32>
      %81 = arith.truncf %80 : vector<16x128xf32> to vector<16x128xbf16>
      %c0_38 = arith.constant 0 : index
      %c0_39 = arith.constant 0 : index
      %82 = vector.load %arg10[%c0_38, %c0_39] : memref<16x128xbf16, #tpu.memory_space<vmem>>, vector<16x128xbf16>
      tpu.vector_store %arg10[%c0_38, %c0_39], %81 {strides = array<i32>} : memref<16x128xbf16, #tpu.memory_space<vmem>>, vector<16x128xbf16>,
      %c0_40 = arith.constant 0 : index
      %c0_41 = arith.constant 0 : index
      %83 = vector.load %arg10[%c0_40, %c0_41] : memref<16x128xbf16, #tpu.memory_space<vmem>>, vector<16x128xbf16>
      %c0_42 = arith.constant 0 : index
      %c0_43 = arith.constant 0 : index
      %84 = vector.load %arg6[%c0_42, %c0_43] : memref<128x512xbf16, #tpu.memory_space<vmem>>, vector<128x512xbf16>
      %cst_44 = arith.constant dense<0.000000e+00> : vector<16x512xf32>
      %85 = tpu.matmul %83, %84, %cst_44 {dimension_numbers = #tpu.dot_dimension_numbers<[1], [0], [0], [1], [0, 0, 1, 1], [], []>} : vector<16x128xbf16>, vector<128x512xbf16>, vector<16x512xf32> -> vector<16x512xf32>
      %c0_45 = arith.constant 0 : index
      %c0_46 = arith.constant 0 : index
      %86 = vector.load %arg7[%c0_45, %c0_46] : memref<1x512xf32, #tpu.memory_space<vmem>>, vector<1x512xf32>
      %cst_47 = arith.constant dense<0.000000e+00> : vector<512xf32>
      %87 = vector.multi_reduction <add>, %85, %cst_47 [0] : vector<16x512xf32> to vector<512xf32>
      %88 = vector.shape_cast %87 : vector<512xf32> to vector<1x512xf32>
      %89 = arith.mulf %85, %85 : vector<16x512xf32>
      %cst_48 = arith.constant dense<0.000000e+00> : vector<512xf32>
      %90 = vector.multi_reduction <add>, %89, %cst_48 [0] : vector<16x512xf32> to vector<512xf32>
      %91 = vector.shape_cast %90 : vector<512xf32> to vector<1x512xf32>
      %cst_49 = arith.constant 0.166666672 : f32
      %92 = vector.broadcast %cst_49 : f32 to vector<1x512xf32>
      %93 = arith.mulf %88, %92 : vector<1x512xf32>
      %cst_50 = arith.constant 0.166666672 : f32
      %94 = vector.broadcast %cst_50 : f32 to vector<1x512xf32>
      %95 = arith.mulf %91, %94 : vector<1x512xf32>
      %96 = arith.mulf %93, %93 : vector<1x512xf32>
      %97 = arith.subf %95, %96 : vector<1x512xf32>
      %cst_51 = arith.constant 0.000000e+00 : f32
      %98 = vector.broadcast %cst_51 : f32 to vector<1x512xf32>
      %99 = arith.maximumf %97, %98 : vector<1x512xf32>
      %cst_52 = arith.constant 9.99999974E-6 : f32
      %100 = vector.broadcast %cst_52 : f32 to vector<1x512xf32>
      %101 = arith.addf %99, %100 : vector<1x512xf32>
      %102 = math.rsqrt %101 : vector<1x512xf32>
      %cst_53 = arith.constant 1.000000e+00 : f32
      %103 = vector.broadcast %cst_53 : f32 to vector<1x512xf32>
      %104 = arith.mulf %103, %102 : vector<1x512xf32>
      %105 = arith.mulf %93, %104 : vector<1x512xf32>
      %106 = arith.subf %86, %105 : vector<1x512xf32>
      %107 = vector.broadcast %104 : vector<1x512xf32> to vector<16x512xf32>
      %108 = arith.mulf %85, %107 : vector<16x512xf32>
      %109 = vector.broadcast %106 : vector<1x512xf32> to vector<16x512xf32>
      %110 = arith.addf %108, %109 : vector<16x512xf32>
      %111 = arith.mulf %110, %110 : vector<16x512xf32>
      %cst_54 = arith.constant dense<0.000000e+00> : vector<16xf32>
      %112 = vector.multi_reduction <add>, %111, %cst_54 [1] : vector<16x512xf32> to vector<16xf32>
      %113 = vector.shape_cast %112 : vector<16xf32> to vector<16x1xf32>
      %cst_55 = arith.constant 1.000000e-24 : f32
      %114 = vector.broadcast %cst_55 : f32 to vector<16x1xf32>
      %115 = arith.maximumf %113, %114 : vector<16x1xf32>
      %116 = math.rsqrt %115 : vector<16x1xf32>
      %117 = vector.broadcast %116 : vector<16x1xf32> to vector<16x512xf32>
      %118 = arith.mulf %110, %117 : vector<16x512xf32>
      %c0_56 = arith.constant 0 : index
      %c0_57 = arith.constant 0 : index
      %119 = vector.load %arg8[%c0_56, %c0_57] : memref<16x512xf32, #tpu.memory_space<vmem>>, vector<16x512xf32>
      tpu.vector_store %arg8[%c0_56, %c0_57], %118 {strides = array<i32>} : memref<16x512xf32, #tpu.memory_space<vmem>>, vector<16x512xf32>,
    } else {
    }
    return
  }
  func.func @transform_0(%arg0: i32) -> (i32, i32) {
    %c0_i32 = arith.constant 0 : i32
    %c0_i32_0 = arith.constant 0 : i32
    return %c0_i32, %arg0 : i32, i32
  }
  func.func @transform_1(%arg0: i32) -> (i32, i32) {
    %c0_i32 = arith.constant 0 : i32
    %c0_i32_0 = arith.constant 0 : i32
    return %arg0, %c0_i32 : i32, i32
  }
  func.func @transform_2(%arg0: i32) -> (i32, i32) {
    %c0_i32 = arith.constant 0 : i32
    %c0_i32_0 = arith.constant 0 : i32
    %c0_i32_1 = arith.constant 0 : i32
    return %c0_i32, %c0_i32_0 : i32, i32
  }
  func.func @transform_3(%arg0: i32) -> (i32, i32) {
    %c0_i32 = arith.constant 0 : i32
    %c0_i32_0 = arith.constant 0 : i32
    %c0_i32_1 = arith.constant 0 : i32
    return %c0_i32, %c0_i32_0 : i32, i32
  }
  func.func @transform_4(%arg0: i32) -> (i32, i32) {
    %c0_i32 = arith.constant 0 : i32
    %c0_i32_0 = arith.constant 0 : i32
    %c0_i32_1 = arith.constant 0 : i32
    return %c0_i32, %c0_i32_0 : i32, i32
  }
  func.func @transform_5(%arg0: i32) -> (i32, i32) {
    %c0_i32 = arith.constant 0 : i32
    %c0_i32_0 = arith.constant 0 : i32
    %c0_i32_1 = arith.constant 0 : i32
    return %c0_i32, %c0_i32_0 : i32, i32
  }
  func.func @transform_6(%arg0: i32) -> (i32, i32) {
    %c0_i32 = arith.constant 0 : i32
    %c0_i32_0 = arith.constant 0 : i32
    %c0_i32_1 = arith.constant 0 : i32
    return %c0_i32, %c0_i32_0 : i32, i32
  }
  func.func @transform_7(%arg0: i32) -> (i32, i32) {
    %c0_i32 = arith.constant 0 : i32
    %c0_i32_0 = arith.constant 0 : i32
    %c0_i32_1 = arith.constant 0 : i32
    return %c0_i32, %c0_i32_0 : i32, i32
  }
}

module attributes {stable_mosaic.version = 11 : i64} {
  func.func @embed_head_kernel(%arg0: i32, %arg1: memref<16x128xbf16, #tpu.memory_space<vmem>>, %arg2: memref<128x128xbf16, #tpu.memory_space<vmem>>, %arg3: memref<1x128xf32, #tpu.memory_space<vmem>>, %arg4: memref<1x128xf32, #tpu.memory_space<vmem>>, %arg5: memref<128x128xbf16, #tpu.memory_space<vmem>>, %arg6: memref<128x512xbf16, #tpu.memory_space<vmem>>, %arg7: memref<1x512xf32, #tpu.memory_space<vmem>>, %arg8: memref<16x512xf32, #tpu.memory_space<vmem>>, %arg9: memref<16x128xf32, #tpu.memory_space<vmem>>, %arg10: memref<16x128xbf16, #tpu.memory_space<vmem>>) attributes {dimension_semantics = [#tpu.dimension_semantics<arbitrary>], iteration_bounds = array<i64: 2>, scalar_prefetch = 0 : i64, scratch_operands = 2 : i64, tpu.core_type = #tpu.core_type<tc>, window_params = [{transform_indices = @transform_0, window_bounds = array<i64: 16, 128>}, {transform_indices = @transform_1, window_bounds = array<i64: 128, 128>}, {pipeline_mode = #tpu.pipeline_mode<synchronous>, transform_indices = @transform_2, window_bounds = array<i64: 1, 128>}, {pipeline_mode = #tpu.pipeline_mode<synchronous>, transform_indices = @transform_3, window_bounds = array<i64: 1, 128>}, {pipeline_mode = #tpu.pipeline_mode<synchronous>, transform_indices = @transform_4, window_bounds = array<i64: 128, 128>}, {pipeline_mode = #tpu.pipeline_mode<synchronous>, transform_indices = @transform_5, window_bounds = array<i64: 128, 512>}, {pipeline_mode = #tpu.pipeline_mode<synchronous>, transform_indices = @transform_6, window_bounds = array<i64: 1, 512>}, {pipeline_mode = #tpu.pipeline_mode<synchronous>, transform_indices = @transform_7, window_bounds = array<i64: 16, 512>}]} {
    %c0_i32 = arith.constant 0 : i32
    %0 = arith.cmpi eq, %arg0, %c0_i32 : i32
    %1 = arith.extui %0 : i1 to i32
    %c0_i32_0 = arith.constant 0 : i32
    %2 = arith.cmpi ne, %1, %c0_i32_0 : i32
    scf.if %2 {
      %cst_9 = arith.constant 0.000000e+00 : f32
      %12 = vector.broadcast %cst_9 : f32 to vector<16x128xf32>
      %c0_10 = arith.constant 0 : index
      %c0_11 = arith.constant 0 : index
      %13 = vector.load %arg9[%c0_10, %c0_11] : memref<16x128xf32, #tpu.memory_space<vmem>>, vector<16x128xf32>
      tpu.vector_store %arg9[%c0_10, %c0_11], %12 {strides = array<i32>} : memref<16x128xf32, #tpu.memory_space<vmem>>, vector<16x128xf32>,
    } else {
    }
    %c0 = arith.constant 0 : index
    %c0_1 = arith.constant 0 : index
    %3 = vector.load %arg9[%c0, %c0_1] : memref<16x128xf32, #tpu.memory_space<vmem>>, vector<16x128xf32>
    %c0_2 = arith.constant 0 : index
    %c0_3 = arith.constant 0 : index
    %4 = vector.load %arg1[%c0_2, %c0_3] : memref<16x128xbf16, #tpu.memory_space<vmem>>, vector<16x128xbf16>
    %c0_4 = arith.constant 0 : index
    %c0_5 = arith.constant 0 : index
    %5 = vector.load %arg2[%c0_4, %c0_5] : memref<128x128xbf16, #tpu.memory_space<vmem>>, vector<128x128xbf16>
    %cst = arith.constant dense<0.000000e+00> : vector<16x128xf32>
    %6 = tpu.matmul %4, %5, %cst {dimension_numbers = #tpu.dot_dimension_numbers<[1], [0], [0], [1], [0, 0, 1, 1], [], []>} : vector<16x128xbf16>, vector<128x128xbf16>, vector<16x128xf32> -> vector<16x128xf32>
    %7 = arith.addf %3, %6 : vector<16x128xf32>
    %c0_6 = arith.constant 0 : index
    %c0_7 = arith.constant 0 : index
    %8 = vector.load %arg9[%c0_6, %c0_7] : memref<16x128xf32, #tpu.memory_space<vmem>>, vector<16x128xf32>
    tpu.vector_store %arg9[%c0_6, %c0_7], %7 {strides = array<i32>} : memref<16x128xf32, #tpu.memory_space<vmem>>, vector<16x128xf32>,
    %c1_i32 = arith.constant 1 : i32
    %9 = arith.cmpi eq, %arg0, %c1_i32 : i32
    %10 = arith.extui %9 : i1 to i32
    %c0_i32_8 = arith.constant 0 : i32
    %11 = arith.cmpi ne, %10, %c0_i32_8 : i32
    scf.if %11 {
      %12 = tpu.iota {dimensions = array<i32: 0>} : vector<16x1xi32>
      %c6_i32 = arith.constant 6 : i32
      %13 = vector.broadcast %c6_i32 : i32 to vector<16x1xi32>
      %14 = arith.cmpi slt, %12, %13 : vector<16x1xi32>
      %15 = arith.extui %14 : vector<16x1xi1> to vector<16x1xi32>
      %16 = arith.sitofp %15 : vector<16x1xi32> to vector<16x1xf32>
      %c0_9 = arith.constant 0 : index
      %c0_10 = arith.constant 0 : index
      %17 = vector.load %arg9[%c0_9, %c0_10] : memref<16x128xf32, #tpu.memory_space<vmem>>, vector<16x128xf32>
      %c0_11 = arith.constant 0 : index
      %c0_12 = arith.constant 0 : index
      %18 = vector.load %arg3[%c0_11, %c0_12] : memref<1x128xf32, #tpu.memory_space<vmem>>, vector<1x128xf32>
      %c0_13 = arith.constant 0 : index
      %c0_14 = arith.constant 0 : index
      %19 = vector.load %arg4[%c0_13, %c0_14] : memref<1x128xf32, #tpu.memory_space<vmem>>, vector<1x128xf32>
      %cst_15 = arith.constant dense<0.000000e+00> : vector<128xf32>
      %20 = vector.multi_reduction <add>, %17, %cst_15 [0] : vector<16x128xf32> to vector<128xf32>
      %21 = vector.shape_cast %20 : vector<128xf32> to vector<1x128xf32>
      %22 = arith.mulf %17, %17 : vector<16x128xf32>
      %cst_16 = arith.constant dense<0.000000e+00> : vector<128xf32>
      %23 = vector.multi_reduction <add>, %22, %cst_16 [0] : vector<16x128xf32> to vector<128xf32>
      %24 = vector.shape_cast %23 : vector<128xf32> to vector<1x128xf32>
      %cst_17 = arith.constant 0.166666672 : f32
      %25 = vector.broadcast %cst_17 : f32 to vector<1x128xf32>
      %26 = arith.mulf %21, %25 : vector<1x128xf32>
      %cst_18 = arith.constant 0.166666672 : f32
      %27 = vector.broadcast %cst_18 : f32 to vector<1x128xf32>
      %28 = arith.mulf %24, %27 : vector<1x128xf32>
      %29 = arith.mulf %26, %26 : vector<1x128xf32>
      %30 = arith.subf %28, %29 : vector<1x128xf32>
      %cst_19 = arith.constant 0.000000e+00 : f32
      %31 = vector.broadcast %cst_19 : f32 to vector<1x128xf32>
      %32 = arith.maximumf %30, %31 : vector<1x128xf32>
      %cst_20 = arith.constant 9.99999974E-6 : f32
      %33 = vector.broadcast %cst_20 : f32 to vector<1x128xf32>
      %34 = arith.addf %32, %33 : vector<1x128xf32>
      %35 = math.rsqrt %34 : vector<1x128xf32>
      %36 = arith.mulf %18, %35 : vector<1x128xf32>
      %37 = arith.mulf %26, %36 : vector<1x128xf32>
      %38 = arith.subf %19, %37 : vector<1x128xf32>
      %39 = vector.broadcast %36 : vector<1x128xf32> to vector<16x128xf32>
      %40 = arith.mulf %17, %39 : vector<16x128xf32>
      %41 = vector.broadcast %38 : vector<1x128xf32> to vector<16x128xf32>
      %42 = arith.addf %40, %41 : vector<16x128xf32>
      %43 = vector.broadcast %16 : vector<16x1xf32> to vector<16x128xf32>
      %44 = arith.mulf %42, %43 : vector<16x128xf32>
      %cst_21 = arith.constant 0.000000e+00 : f32
      %45 = vector.broadcast %cst_21 : f32 to vector<16x128xf32>
      %46 = arith.maximumf %44, %45 : vector<16x128xf32>
      %47 = arith.truncf %46 : vector<16x128xf32> to vector<16x128xbf16>
      %c0_22 = arith.constant 0 : index
      %c0_23 = arith.constant 0 : index
      %48 = vector.load %arg10[%c0_22, %c0_23] : memref<16x128xbf16, #tpu.memory_space<vmem>>, vector<16x128xbf16>
      tpu.vector_store %arg10[%c0_22, %c0_23], %47 {strides = array<i32>} : memref<16x128xbf16, #tpu.memory_space<vmem>>, vector<16x128xbf16>,
      %c0_24 = arith.constant 0 : index
      %c0_25 = arith.constant 0 : index
      %49 = vector.load %arg10[%c0_24, %c0_25] : memref<16x128xbf16, #tpu.memory_space<vmem>>, vector<16x128xbf16>
      %c0_26 = arith.constant 0 : index
      %c0_27 = arith.constant 0 : index
      %50 = vector.load %arg5[%c0_26, %c0_27] : memref<128x128xbf16, #tpu.memory_space<vmem>>, vector<128x128xbf16>
      %cst_28 = arith.constant dense<0.000000e+00> : vector<16x128xf32>
      %51 = tpu.matmul %49, %50, %cst_28 {dimension_numbers = #tpu.dot_dimension_numbers<[1], [0], [0], [1], [0, 0, 1, 1], [], []>} : vector<16x128xbf16>, vector<128x128xbf16>, vector<16x128xf32> -> vector<16x128xf32>
      %cst_29 = arith.constant dense<0.000000e+00> : vector<128xf32>
      %52 = vector.multi_reduction <add>, %51, %cst_29 [0] : vector<16x128xf32> to vector<128xf32>
      %53 = vector.shape_cast %52 : vector<128xf32> to vector<1x128xf32>
      %54 = arith.mulf %51, %51 : vector<16x128xf32>
      %cst_30 = arith.constant dense<0.000000e+00> : vector<128xf32>
      %55 = vector.multi_reduction <add>, %54, %cst_30 [0] : vector<16x128xf32> to vector<128xf32>
      %56 = vector.shape_cast %55 : vector<128xf32> to vector<1x128xf32>
      %cst_31 = arith.constant 0.166666672 : f32
      %57 = vector.broadcast %cst_31 : f32 to vector<1x128xf32>
      %58 = arith.mulf %53, %57 : vector<1x128xf32>
      %cst_32 = arith.constant 0.166666672 : f32
      %59 = vector.broadcast %cst_32 : f32 to vector<1x128xf32>
      %60 = arith.mulf %56, %59 : vector<1x128xf32>
      %61 = arith.mulf %58, %58 : vector<1x128xf32>
      %62 = arith.subf %60, %61 : vector<1x128xf32>
      %cst_33 = arith.constant 0.000000e+00 : f32
      %63 = vector.broadcast %cst_33 : f32 to vector<1x128xf32>
      %64 = arith.maximumf %62, %63 : vector<1x128xf32>
      %cst_34 = arith.constant 9.99999974E-6 : f32
      %65 = vector.broadcast %cst_34 : f32 to vector<1x128xf32>
      %66 = arith.addf %64, %65 : vector<1x128xf32>
      %67 = math.rsqrt %66 : vector<1x128xf32>
      %cst_35 = arith.constant 1.000000e+00 : f32
      %68 = vector.broadcast %cst_35 : f32 to vector<1x128xf32>
      %69 = arith.mulf %68, %67 : vector<1x128xf32>
      %70 = arith.mulf %58, %69 : vector<1x128xf32>
      %cst_36 = arith.constant 0.000000e+00 : f32
      %71 = vector.broadcast %cst_36 : f32 to vector<1x128xf32>
      %72 = arith.subf %71, %70 : vector<1x128xf32>
      %73 = vector.broadcast %69 : vector<1x128xf32> to vector<16x128xf32>
      %74 = arith.mulf %51, %73 : vector<16x128xf32>
      %75 = vector.broadcast %72 : vector<1x128xf32> to vector<16x128xf32>
      %76 = arith.addf %74, %75 : vector<16x128xf32>
      %77 = vector.broadcast %16 : vector<16x1xf32> to vector<16x128xf32>
      %78 = arith.mulf %76, %77 : vector<16x128xf32>
      %cst_37 = arith.constant 0.000000e+00 : f32
      %79 = vector.broadcast %cst_37 : f32 to vector<16x128xf32>
      %80 = arith.maximumf %78, %79 : vector<16x128xf32>
      %81 = arith.truncf %80 : vector<16x128xf32> to vector<16x128xbf16>
      %c0_38 = arith.constant 0 : index
      %c0_39 = arith.constant 0 : index
      %82 = vector.load %arg10[%c0_38, %c0_39] : memref<16x128xbf16, #tpu.memory_space<vmem>>, vector<16x128xbf16>
      tpu.vector_store %arg10[%c0_38, %c0_39], %81 {strides = array<i32>} : memref<16x128xbf16, #tpu.memory_space<vmem>>, vector<16x128xbf16>,
      %c0_40 = arith.constant 0 : index
      %c0_41 = arith.constant 0 : index
      %83 = vector.load %arg10[%c0_40, %c0_41] : memref<16x128xbf16, #tpu.memory_space<vmem>>, vector<16x128xbf16>
      %c0_42 = arith.constant 0 : index
      %c0_43 = arith.constant 0 : index
      %84 = vector.load %arg6[%c0_42, %c0_43] : memref<128x512xbf16, #tpu.memory_space<vmem>>, vector<128x512xbf16>
      %cst_44 = arith.constant dense<0.000000e+00> : vector<16x512xf32>
      %85 = tpu.matmul %83, %84, %cst_44 {dimension_numbers = #tpu.dot_dimension_numbers<[1], [0], [0], [1], [0, 0, 1, 1], [], []>} : vector<16x128xbf16>, vector<128x512xbf16>, vector<16x512xf32> -> vector<16x512xf32>
      %c0_45 = arith.constant 0 : index
      %c0_46 = arith.constant 0 : index
      %86 = vector.load %arg7[%c0_45, %c0_46] : memref<1x512xf32, #tpu.memory_space<vmem>>, vector<1x512xf32>
      %cst_47 = arith.constant dense<0.000000e+00> : vector<512xf32>
      %87 = vector.multi_reduction <add>, %85, %cst_47 [0] : vector<16x512xf32> to vector<512xf32>
      %88 = vector.shape_cast %87 : vector<512xf32> to vector<1x512xf32>
      %89 = arith.mulf %85, %85 : vector<16x512xf32>
      %cst_48 = arith.constant dense<0.000000e+00> : vector<512xf32>
      %90 = vector.multi_reduction <add>, %89, %cst_48 [0] : vector<16x512xf32> to vector<512xf32>
      %91 = vector.shape_cast %90 : vector<512xf32> to vector<1x512xf32>
      %cst_49 = arith.constant 0.166666672 : f32
      %92 = vector.broadcast %cst_49 : f32 to vector<1x512xf32>
      %93 = arith.mulf %88, %92 : vector<1x512xf32>
      %cst_50 = arith.constant 0.166666672 : f32
      %94 = vector.broadcast %cst_50 : f32 to vector<1x512xf32>
      %95 = arith.mulf %91, %94 : vector<1x512xf32>
      %96 = arith.mulf %93, %93 : vector<1x512xf32>
      %97 = arith.subf %95, %96 : vector<1x512xf32>
      %cst_51 = arith.constant 0.000000e+00 : f32
      %98 = vector.broadcast %cst_51 : f32 to vector<1x512xf32>
      %99 = arith.maximumf %97, %98 : vector<1x512xf32>
      %cst_52 = arith.constant 9.99999974E-6 : f32
      %100 = vector.broadcast %cst_52 : f32 to vector<1x512xf32>
      %101 = arith.addf %99, %100 : vector<1x512xf32>
      %102 = math.rsqrt %101 : vector<1x512xf32>
      %cst_53 = arith.constant 1.000000e+00 : f32
      %103 = vector.broadcast %cst_53 : f32 to vector<1x512xf32>
      %104 = arith.mulf %103, %102 : vector<1x512xf32>
      %105 = arith.mulf %93, %104 : vector<1x512xf32>
      %106 = arith.subf %86, %105 : vector<1x512xf32>
      %107 = vector.broadcast %104 : vector<1x512xf32> to vector<16x512xf32>
      %108 = arith.mulf %85, %107 : vector<16x512xf32>
      %109 = vector.broadcast %106 : vector<1x512xf32> to vector<16x512xf32>
      %110 = arith.addf %108, %109 : vector<16x512xf32>
      %111 = arith.mulf %110, %110 : vector<16x512xf32>
      %cst_54 = arith.constant dense<0.000000e+00> : vector<16xf32>
      %112 = vector.multi_reduction <add>, %111, %cst_54 [1] : vector<16x512xf32> to vector<16xf32>
      %113 = vector.shape_cast %112 : vector<16xf32> to vector<16x1xf32>
      %cst_55 = arith.constant 1.000000e-24 : f32
      %114 = vector.broadcast %cst_55 : f32 to vector<16x1xf32>
      %115 = arith.maximumf %113, %114 : vector<16x1xf32>
      %116 = math.rsqrt %115 : vector<16x1xf32>
      %117 = vector.broadcast %116 : vector<16x1xf32> to vector<16x512xf32>
      %118 = arith.mulf %110, %117 : vector<16x512xf32>
      %c0_56 = arith.constant 0 : index
      %c0_57 = arith.constant 0 : index
      %119 = vector.load %arg8[%c0_56, %c0_57] : memref<16x512xf32, #tpu.memory_space<vmem>>, vector<16x512xf32>
      tpu.vector_store %arg8[%c0_56, %c0_57], %118 {strides = array<i32>} : memref<16x512xf32, #tpu.memory_space<vmem>>, vector<16x512xf32>,
    } else {
    }
    return
  }
  func.func @transform_0(%arg0: i32) -> (i32, i32) {
    %c0_i32 = arith.constant 0 : i32
    %c0_i32_0 = arith.constant 0 : i32
    return %c0_i32, %arg0 : i32, i32
  }
  func.func @transform_1(%arg0: i32) -> (i32, i32) {
    %c0_i32 = arith.constant 0 : i32
    %c0_i32_0 = arith.constant 0 : i32
    return %arg0, %c0_i32 : i32, i32
  }
  func.func @transform_2(%arg0: i32) -> (i32, i32) {
    %c0_i32 = arith.constant 0 : i32
    %c0_i32_0 = arith.constant 0 : i32
    %c0_i32_1 = arith.constant 0 : i32
    return %c0_i32, %c0_i32_0 : i32, i32
  }
  func.func @transform_3(%arg0: i32) -> (i32, i32) {
    %c0_i32 = arith.constant 0 : i32
    %c0_i32_0 = arith.constant 0 : i32
    %c0_i32_1 = arith.constant 0 : i32
    return %c0_i32, %c0_i32_0 : i32, i32
  }
  func.func @transform_4(%arg0: i32) -> (i32, i32) {
    %c0_i32 = arith.constant 0 : i32
    %c0_i32_0 = arith.constant 0 : i32
    %c0_i32_1 = arith.constant 0 : i32
    return %c0_i32, %c0_i32_0 : i32, i32
  }
  func.func @transform_5(%arg0: i32) -> (i32, i32) {
    %c0_i32 = arith.constant 0 : i32
    %c0_i32_0 = arith.constant 0 : i32
    %c0_i32_1 = arith.constant 0 : i32
    return %c0_i32, %c0_i32_0 : i32, i32
  }
  func.func @transform_6(%arg0: i32) -> (i32, i32) {
    %c0_i32 = arith.constant 0 : i32
    %c0_i32_0 = arith.constant 0 : i32
    %c0_i32_1 = arith.constant 0 : i32
    return %c0_i32, %c0_i32_0 : i32, i32
  }
  func.func @transform_7(%arg0: i32) -> (i32, i32) {
    %c0_i32 = arith.constant 0 : i32
    %c0_i32_0 = arith.constant 0 : i32
    %c0_i32_1 = arith.constant 0 : i32
    return %c0_i32, %c0_i32_0 : i32, i32
  }
}

</mosaic_0001>

<llo_original>
// kernel: tpu_custom_call.1
$region0: #{tpu_custom_call.1}
  #allocation0 [shape = 'u32[]', space=smem, size = 0x4, offset = 0x4, fixed_abs, tag = 'smem constant byte address 0x4 - core index']
  #allocation1 [shape = 'u32[144,128]{1,0:T(1,128)}', space=vmem, size = 0x12000, scoped, tag = 'internal scratch']
  #allocation2 [shape = 'f32[16,128]{1,0:T(8,128)}', space=vmem, size = 0x2000, scoped, tag = 'scratch operand']
  #allocation3 [shape = 'bf16[16,128]{1,0:T(8,128)(2,1)}', space=vmem, size = 0x1000, scoped, tag = 'scratch operand']
  %s0 = inlined_call_operand.hbm [shape: bf16[16,256], index: 0, kind: input, shape index: {}]
  %s1 = inlined_call_operand.hbm [shape: bf16[256,128], index: 1, kind: input, shape index: {}]
  %s2 = inlined_call_operand.vmem [shape: f32[1,128], index: 2, kind: input, shape index: {}]
  %s3 = inlined_call_operand.vmem [shape: f32[1,128], index: 3, kind: input, shape index: {}]
  %s4 = inlined_call_operand.hbm [shape: bf16[128,128], index: 4, kind: input, shape index: {}]
  %s5 = inlined_call_operand.hbm [shape: bf16[128,512], index: 5, kind: input, shape index: {}]
  %s6 = inlined_call_operand.vmem [shape: f32[1,512], index: 6, kind: input, shape index: {}]
  %s7 = inlined_call_operand.hbm [shape: f32[16,512], index: 7, kind: output, shape index: {}]
  %s8 = sld [smem:[#allocation0]]
  $region85: #{tpu_custom_call.1} parent=0
    _
  %s10 = ssub.s32 1, %s8
  %s11 = scalar_select 0, %s10, %s8
  $region1: #{tpu_custom_call.1} parent=0
    #allocation4 [shape = 'u8[8192]{0}', space=vmem, size = 0x2000, scoped, tag = 'input window, operand 0']
    #allocation5 [shape = 's32[2]{0}', space=sflag, size = 0x8, scoped, tag = 'scoped memory for tpu_custom_call.1']
    #allocation6 [shape = 's32[2]{0}', space=sflag, size = 0x8, scoped, tag = 'scoped memory for tpu_custom_call.1']
    #allocation7 [shape = 'u8[65536]{0}', space=vmem, size = 0x10000, scoped, tag = 'input window, operand 1']
    #allocation8 [shape = 's32[2]{0}', space=sflag, size = 0x8, scoped, tag = 'scoped memory for tpu_custom_call.1']
    #allocation9 [shape = 'u8[32768]{0}', space=vmem, size = 0x8000, scoped, tag = 'input window, operand 4, single buffered']
    #allocation10 [shape = 'u8[131072]{0}', space=vmem, size = 0x20000, scoped, tag = 'input window, operand 5, single buffered']
    #allocation11 [shape = 's32[1]{0}', space=sflag, size = 0x4, scoped, tag = 'scoped memory for tpu_custom_call.1']
    #allocation12 [shape = 'u8[32768]{0}', space=vmem, size = 0x8000, scoped, tag = 'output window, operand 0, single buffered']
    %12 = vsyncpa [#allocation5], 0
    %s13 = scalar_lea.sflag [#allocation5], 1
    %14 = vsyncpa %s13, 0
    %15 = vsyncpa [#allocation8], 0
    %s16 = scalar_lea.sflag [#allocation8], 1
    %17 = vsyncpa %s16, 0
    %18 = vsyncpa [#allocation11], 0
    %19 = vsyncpa [#allocation6], 0
    loop: start=0, step=1, limit=4
    $region2: #{tpu_custom_call.1} parent=1 // loop_pre_header
      _
    $region3: #{tpu_custom_call.1} parent=1 // loop_header
      %s21 = sphi 0, %s25
      %p22 = scmp.ge.s32.totalorder %s21, 4
      %s31 = sphi 0, %s33
      %s34 = sphi 0, %s31
      %s35 = sphi 0, %s34
      %s51 = sphi 0, %s35
      %s57 = sphi 0, %s59
      %s60 = sphi 0, %s57
      %s61 = sphi 0, %s60
      %s77 = sphi 0, %s61
      %s81 = sphi 0, %s81
      %s83 = sphi 0, %s81
      %s84 = sphi 0, %s83
      %s98 = sphi 0, %s84
      %s102 = sphi 0, %s102
      %s104 = sphi 0, %s102
      %s105 = sphi 0, %s104
      %s119 = sphi 0, %s105
      %s123 = sphi 0, %s123
      %s125 = sphi 0, %s123
      %s126 = sphi 0, %s125
      %s140 = sphi 0, %s126
      %s144 = sphi 0, %s144
      %s146 = sphi 0, %s144
      %s147 = sphi 0, %s146
      %s161 = sphi 0, %s147
      %s165 = sphi 0, %s165
      %s167 = sphi 0, %s165
      %s168 = sphi 0, %s167
      %s182 = sphi 0, %s168
      %s186 = sphi 0, %s186
      %s188 = sphi 0, %s186
      %s189 = sphi 0, %s188
      %s203 = sphi 0, %s189
    $region4: #{tpu_custom_call.1} parent=1 // loop_header_branch
      %24 = sbr.rel (%p22) target = $region8
    $region5: #{tpu_custom_call.1} parent=1 // loop_body
      %s26 = ssub.s32 %s21, 1
      %s27 = ssub.s32 %s21, 2
      %s28 = sadd.s32 %s21, 1
      %s29 = ssub.s32 %s21, %s28
      %p30 = scmp.eq.s32.totalorder %s29, 0
      %s32 = sadd.s32 %s31, 1
      %s33 = scalar_select %p30, %s31, %s32
      %p36 = pneg %p30
      %p37 = scmp.eq.s32.totalorder %s21, 1
      %p38 = por %p36, %p37
      %p39 = scmp.ne.s32.totalorder %s31, %s34
      %p40 = scmp.eq.s32.totalorder %s21, 0
      %p41 = por %p39, %p40
      %p42 = scmp.ne.s32.totalorder %s31, %s34
      %p43 = scmp.eq.s32.totalorder %s26, 1
      %p44 = por %p42, %p43
      %p45 = scmp.ne.s32.totalorder %s34, %s35
      %p46 = scmp.eq.s32.totalorder %s26, 0
      %p47 = por %p45, %p46
      %p48 = scmp.ne.s32.totalorder %s34, %s35
      %p49 = scmp.eq.s32.totalorder %s27, 1
      %p50 = por %p48, %p49
      %p52 = scmp.ne.s32.totalorder %s35, %s51
      %p53 = scmp.eq.s32.totalorder %s27, 0
      %p54 = por %p52, %p53
      %s55 = ssub.s32 %s21, %s28
      %p56 = scmp.eq.s32.totalorder %s55, 0
      %s58 = sadd.s32 %s57, 1
      %s59 = scalar_select %p56, %s57, %s58
      %p62 = pneg %p56
      %p63 = scmp.eq.s32.totalorder %s21, 1
      %p64 = por %p62, %p63
      %p65 = scmp.ne.s32.totalorder %s57, %s60
      %p66 = scmp.eq.s32.totalorder %s21, 0
      %p67 = por %p65, %p66
      %p68 = scmp.ne.s32.totalorder %s57, %s60
      %p69 = scmp.eq.s32.totalorder %s26, 1
      %p70 = por %p68, %p69
      %p71 = scmp.ne.s32.totalorder %s60, %s61
      %p72 = scmp.eq.s32.totalorder %s26, 0
      %p73 = por %p71, %p72
      %p74 = scmp.ne.s32.totalorder %s60, %s61
      %p75 = scmp.eq.s32.totalorder %s27, 1
      %p76 = por %p74, %p75
      %p78 = scmp.ne.s32.totalorder %s61, %s77
      %p79 = scmp.eq.s32.totalorder %s27, 0
      %p80 = por %p78, %p79
      %s82 = sadd.s32 %s81, 1
      %p85 = scmp.eq.s32.totalorder %s21, 1
      %p86 = scmp.ne.s32.totalorder %s81, %s83
      %p87 = scmp.eq.s32.totalorder %s21, 0
      %p88 = por %p86, %p87
      %p89 = scmp.ne.s32.totalorder %s81, %s83
      %p90 = scmp.eq.s32.totalorder %s26, 1
      %p91 = por %p89, %p90
      %p92 = scmp.ne.s32.totalorder %s83, %s84
      %p93 = scmp.eq.s32.totalorder %s26, 0
      %p94 = por %p92, %p93
      %p95 = scmp.ne.s32.totalorder %s83, %s84
      %p96 = scmp.eq.s32.totalorder %s27, 1
      %p97 = por %p95, %p96
      %p99 = scmp.ne.s32.totalorder %s84, %s98
      %p100 = scmp.eq.s32.totalorder %s27, 0
      %p101 = por %p99, %p100
      %s103 = sadd.s32 %s102, 1
      %p106 = scmp.eq.s32.totalorder %s21, 1
      %p107 = scmp.ne.s32.totalorder %s102, %s104
      %p108 = scmp.eq.s32.totalorder %s21, 0
      %p109 = por %p107, %p108
      %p110 = scmp.ne.s32.totalorder %s102, %s104
      %p111 = scmp.eq.s32.totalorder %s26, 1
      %p112 = por %p110, %p111
      %p113 = scmp.ne.s32.totalorder %s104, %s105
      %p114 = scmp.eq.s32.totalorder %s26, 0
      %p115 = por %p113, %p114
      %p116 = scmp.ne.s32.totalorder %s104, %s105
      %p117 = scmp.eq.s32.totalorder %s27, 1
      %p118 = por %p116, %p117
      %p120 = scmp.ne.s32.totalorder %s105, %s119
      %p121 = scmp.eq.s32.totalorder %s27, 0
      %p122 = por %p120, %p121
      %s124 = sadd.s32 %s123, 1
      %p127 = scmp.eq.s32.totalorder %s21, 1
      %p128 = scmp.ne.s32.totalorder %s123, %s125
      %p129 = scmp.eq.s32.totalorder %s21, 0
      %p130 = por %p128, %p129
      %p131 = scmp.ne.s32.totalorder %s123, %s125
      %p132 = scmp.eq.s32.totalorder %s26, 1
      %p133 = por %p131, %p132
      %p134 = scmp.ne.s32.totalorder %s125, %s126
      %p135 = scmp.eq.s32.totalorder %s26, 0
      %p136 = por %p134, %p135
      %p137 = scmp.ne.s32.totalorder %s125, %s126
      %p138 = scmp.eq.s32.totalorder %s27, 1
      %p139 = por %p137, %p138
      %p141 = scmp.ne.s32.totalorder %s126, %s140
      %p142 = scmp.eq.s32.totalorder %s27, 0
      %p143 = por %p141, %p142
      %s145 = sadd.s32 %s144, 1
      %p148 = scmp.eq.s32.totalorder %s21, 1
      %p149 = scmp.ne.s32.totalorder %s144, %s146
      %p150 = scmp.eq.s32.totalorder %s21, 0
      %p151 = por %p149, %p150
      %p152 = scmp.ne.s32.totalorder %s144, %s146
      %p153 = scmp.eq.s32.totalorder %s26, 1
      %p154 = por %p152, %p153
      %p155 = scmp.ne.s32.totalorder %s146, %s147
      %p156 = scmp.eq.s32.totalorder %s26, 0
      %p157 = por %p155, %p156
      %p158 = scmp.ne.s32.totalorder %s146, %s147
      %p159 = scmp.eq.s32.totalorder %s27, 1
      %p160 = por %p158, %p159
      %p162 = scmp.ne.s32.totalorder %s147, %s161
      %p163 = scmp.eq.s32.totalorder %s27, 0
      %p164 = por %p162, %p163
      %s166 = sadd.s32 %s165, 1
      %p169 = scmp.eq.s32.totalorder %s21, 1
      %p170 = scmp.ne.s32.totalorder %s165, %s167
      %p171 = scmp.eq.s32.totalorder %s21, 0
      %p172 = por %p170, %p171
      %p173 = scmp.ne.s32.totalorder %s165, %s167
      %p174 = scmp.eq.s32.totalorder %s26, 1
      %p175 = por %p173, %p174
      %p176 = scmp.ne.s32.totalorder %s167, %s168
      %p177 = scmp.eq.s32.totalorder %s26, 0
      %p178 = por %p176, %p177
      %p179 = scmp.ne.s32.totalorder %s167, %s168
      %p180 = scmp.eq.s32.totalorder %s27, 1
      %p181 = por %p179, %p180
      %p183 = scmp.ne.s32.totalorder %s168, %s182
      %p184 = scmp.eq.s32.totalorder %s27, 0
      %p185 = por %p183, %p184
      %s187 = sadd.s32 %s186, 1
      %p190 = scmp.eq.s32.totalorder %s21, 1
      %p191 = scmp.ne.s32.totalorder %s186, %s188
      %p192 = scmp.eq.s32.totalorder %s21, 0
      %p193 = por %p191, %p192
      %p194 = scmp.ne.s32.totalorder %s186, %s188
      %p195 = scmp.eq.s32.totalorder %s26, 1
      %p196 = por %p194, %p195
      %p197 = scmp.ne.s32.totalorder %s188, %s189
      %p198 = scmp.eq.s32.totalorder %s26, 0
      %p199 = por %p197, %p198
      %p200 = scmp.ne.s32.totalorder %s188, %s189
      %p201 = scmp.eq.s32.totalorder %s27, 1
      %p202 = por %p200, %p201
      %p204 = scmp.ne.s32.totalorder %s189, %s203
      %p205 = scmp.eq.s32.totalorder %s27, 0
      %p206 = por %p204, %p205
      %p207 = scmp.le.s32.totalorder 1, %s21
      %p208 = scmp.lt.s32.totalorder %s21, 3
      %p209 = pnand %p207, %p208
      %p210 = pneg %p209
      // Predicated region
      $region9: #{tpu_custom_call.1} parent=5 // pred_check
        _
      $region10: #{tpu_custom_call.1} parent=5 // pred_check_branch
        %212 = sbr.rel (%p209) target = $region12
      $region11: #{tpu_custom_call.1} parent=5 // pred_region
        %s213 = ssub.s32 %s21, 1
        // Predicated region
        $region13: #{tpu_custom_call.1} parent=11 // pred_check
          %p214 = pneg %p94
        $region14: #{tpu_custom_call.1} parent=11 // pred_check_branch
          %216 = sbr.rel (%p214) target = $region16
        $region15: #{tpu_custom_call.1} parent=11 // pred_region
          _
        $region16: #{tpu_custom_call.1} parent=11 // pred_fallthru
          _
        // Predicated region
        $region17: #{tpu_custom_call.1} parent=11 // pred_check
          %p217 = pneg %p115
        $region18: #{tpu_custom_call.1} parent=11 // pred_check_branch
          %219 = sbr.rel (%p217) target = $region20
        $region19: #{tpu_custom_call.1} parent=11 // pred_region
          _
        $region20: #{tpu_custom_call.1} parent=11 // pred_fallthru
          _
        // Predicated region
        $region21: #{tpu_custom_call.1} parent=11 // pred_check
          %p220 = pneg %p136
        $region22: #{tpu_custom_call.1} parent=11 // pred_check_branch
          %222 = sbr.rel (%p220) target = $region24
        $region23: #{tpu_custom_call.1} parent=11 // pred_region
          %s224 = ssub.s32 1024, 1024
          %225 = vsyncadd [#allocation8], %s224
          %s226 = sshll.u32 [#allocation9], 4
          %s227 = int_to_ptr.vmem [resolvable:$true] %s226
          %232 = dma.hbm_to_vmem [thread:$0]  %s4, 1024, %s227, [#allocation8], 64, 64, 4
        $region24: #{tpu_custom_call.1} parent=11 // pred_fallthru
          _
        // Predicated region
        $region25: #{tpu_custom_call.1} parent=11 // pred_check
          %p233 = pneg %p157
        $region26: #{tpu_custom_call.1} parent=11 // pred_check_branch
          %235 = sbr.rel (%p233) target = $region28
        $region27: #{tpu_custom_call.1} parent=11 // pred_region
          %s237 = ssub.s32 4096, 4096
          %238 = vsyncadd [#allocation11], %s237
          %s239 = sshll.u32 [#allocation10], 4
          %s240 = int_to_ptr.vmem [resolvable:$true] %s239
          %245 = dma.hbm_to_vmem [thread:$0]  %s5, 4096, %s240, [#allocation11], 256, 256, 16
        $region28: #{tpu_custom_call.1} parent=11 // pred_fallthru
          _
        // Predicated region
        $region29: #{tpu_custom_call.1} parent=11 // pred_check
          %p246 = pneg %p178
        $region30: #{tpu_custom_call.1} parent=11 // pred_check_branch
          %248 = sbr.rel (%p246) target = $region32
        $region31: #{tpu_custom_call.1} parent=11 // pred_region
          _
        $region32: #{tpu_custom_call.1} parent=11 // pred_fallthru
          _
      $region12: #{tpu_custom_call.1} parent=5 // pred_fallthru
        _
      %p249 = scmp.lt.s32.totalorder %s21, 2
      // Predicated region
      $region33: #{tpu_custom_call.1} parent=5 // pred_check
        %p250 = pneg %p249
      $region34: #{tpu_custom_call.1} parent=5 // pred_check_branch
        %252 = sbr.rel (%p250) target = $region36
      $region35: #{tpu_custom_call.1} parent=5 // pred_region
        // Predicated region
        $region37: #{tpu_custom_call.1} parent=35 // pred_check
          %p253 = pneg %p41
        $region38: #{tpu_custom_call.1} parent=35 // pred_check_branch
          %255 = sbr.rel (%p253) target = $region40
        $region39: #{tpu_custom_call.1} parent=35 // pred_region
          %s256 = sand.u32 %s31, 1
          %s257 = scalar_lea.sflag [#allocation5], %s256
          %s258 = sand.u32 %s31, 1
          %s259 = smul.addr %s258, 8
          %s260 = scalar_lea.vmem [#allocation4], %s259
          %s262 = ssub.s32 128, 128
          %263 = vsyncadd %s257, %s262
          %s264 = smul.addr %s21, 64
          %s265 = scalar_lea.hbm %s0, %s264
          %s266 = sshll.u32 %s260, 4
          %s267 = int_to_ptr.vmem [resolvable:$true] %s266
          %272 = dma.hbm_to_vmem [thread:$0]  %s265, 128, %s267, %s257, 128, 64, 4
        $region40: #{tpu_custom_call.1} parent=35 // pred_fallthru
          _
        // Predicated region
        $region41: #{tpu_custom_call.1} parent=35 // pred_check
          %p273 = pneg %p67
        $region42: #{tpu_custom_call.1} parent=35 // pred_check_branch
          %275 = sbr.rel (%p273) target = $region44
        $region43: #{tpu_custom_call.1} parent=35 // pred_region
          %s276 = sand.u32 %s21, 1
          %s277 = scalar_lea.sflag [#allocation8], %s276
          %s278 = sand.u32 %s57, 1
          %s279 = smul.addr %s278, 64
          %s280 = scalar_lea.vmem [#allocation7], %s279
          %s281 = smul.u32 16, %s21
          %s283 = ssub.s32 1024, 1024
          %284 = vsyncadd %s277, %s283
          %s285 = smul.addr %s281, 64
          %s286 = scalar_lea.hbm %s1, %s285
          %s287 = sshll.u32 %s280, 4
          %s288 = int_to_ptr.vmem [resolvable:$true] %s287
          %293 = dma.hbm_to_vmem [thread:$0]  %s286, 1024, %s288, %s277, 64, 64, 4
        $region44: #{tpu_custom_call.1} parent=35 // pred_fallthru
          _
      $region36: #{tpu_custom_call.1} parent=5 // pred_fallthru
        _
      %p294 = scmp.le.s32.totalorder 1, %s21
      %p295 = scmp.lt.s32.totalorder %s21, 3
      %p296 = pnand %p294, %p295
      %p297 = pneg %p296
      // Predicated region
      $region45: #{tpu_custom_call.1} parent=5 // pred_check
        _
      $region46: #{tpu_custom_call.1} parent=5 // pred_check_branch
        %299 = sbr.rel (%p296) target = $region48
      $region47: #{tpu_custom_call.1} parent=5 // pred_region
        %s300 = ssub.s32 %s21, 1
        %s301 = sand.u32 %s34, 1
        %s302 = scalar_lea.sflag [#allocation5], %s301
        %s303 = sand.u32 %s34, 1
        %s304 = smul.addr %s303, 8
        %s305 = scalar_lea.vmem [#allocation4], %s304
        // Predicated region
        $region49: #{tpu_custom_call.1} parent=47 // pred_check
          %p306 = pneg %p47
        $region50: #{tpu_custom_call.1} parent=47 // pred_check_branch
          %308 = sbr.rel (%p306) target = $region52
        $region51: #{tpu_custom_call.1} parent=47 // pred_region
          %309 = dma.done %s302, 128
        $region52: #{tpu_custom_call.1} parent=47 // pred_fallthru
          _
        %s310 = sand.u32 %s26, 1
        %s311 = scalar_lea.sflag [#allocation8], %s310
        %s312 = sand.u32 %s60, 1
        %s313 = smul.addr %s312, 64
        %s314 = scalar_lea.vmem [#allocation7], %s313
        // Predicated region
        $region53: #{tpu_custom_call.1} parent=47 // pred_check
          %p315 = pneg %p73
        $region54: #{tpu_custom_call.1} parent=47 // pred_check_branch
          %317 = sbr.rel (%p315) target = $region56
        $region55: #{tpu_custom_call.1} parent=47 // pred_region
          %318 = dma.done %s311, 1024
        $region56: #{tpu_custom_call.1} parent=47 // pred_fallthru
          _
        // Predicated region
        $region57: #{tpu_custom_call.1} parent=47 // pred_check
          %p319 = pneg %p136
        $region58: #{tpu_custom_call.1} parent=47 // pred_check_branch
          %321 = sbr.rel (%p319) target = $region60
        $region59: #{tpu_custom_call.1} parent=47 // pred_region
          %322 = dma.done [#allocation8], 1024
        $region60: #{tpu_custom_call.1} parent=47 // pred_fallthru
          _
        // Predicated region
        $region61: #{tpu_custom_call.1} parent=47 // pred_check
          %p323 = pneg %p157
        $region62: #{tpu_custom_call.1} parent=47 // pred_check_branch
          %325 = sbr.rel (%p323) target = $region64
        $region63: #{tpu_custom_call.1} parent=47 // pred_region
          %326 = dma.done [#allocation11], 4096
        $region64: #{tpu_custom_call.1} parent=47 // pred_fallthru
          _
        %s327 = sand.u32 %s34, 1
        %s328 = scalar_lea.sflag [#allocation5], %s327
        %s329 = sand.u32 %s34, 1
        %s330 = smul.addr %s329, 8
        %s331 = scalar_lea.vmem [#allocation4], %s330
        %p332 = pneg %p47
        %p333 = pneg %p44
        %s334 = sand.u32 %s26, 1
        %s335 = scalar_lea.sflag [#allocation8], %s334
        %s336 = sand.u32 %s60, 1
        %s337 = smul.addr %s336, 64
        %s338 = scalar_lea.vmem [#allocation7], %s337
        %p339 = pneg %p73
        %p340 = pneg %p70
        %p341 = pneg %p94
        %p342 = pneg %p91
        %p343 = pneg %p115
        %p344 = pneg %p112
        %p345 = pneg %p136
        %p346 = pneg %p133
        %p347 = pneg %p157
        %p348 = pneg %p154
        %p349 = pneg %p178
        %p350 = pneg %p175
        %p351 = pneg %p199
        %p352 = pneg %p196
        %s353 = smul.u32 16, %s26
        %p355 = scmp.eq.s32.totalorder %s26, 0
        // Predicated region
        $region65: #{tpu_custom_call.1} parent=47 // pred_check
          %p356 = pneg %p355
        $region66: #{tpu_custom_call.1} parent=47 // pred_check_branch
          %358 = sbr.rel (%p356) target = $region68
        $region67: #{tpu_custom_call.1} parent=47 // pred_region
          %359 = vst [vmem:[#allocation2] sm:$0xff] 0.0
          %360 = vst [vmem:[#allocation2 + $0x8] sm:$0xff] 0.0
        $region68: #{tpu_custom_call.1} parent=47 // pred_fallthru
          _
        %v361 = vld [vmem:[#allocation2] sm:$0xff]
        %v362 = vld [vmem:[#allocation2 + $0x8] sm:$0xff]
        %v363 = vld [vmem:[%s305] sm:$0xf]
        %v364 = vld [vmem:[%s305 + $0x4] sm:$0xf]
        %v365 = vld [vmem:[%s314] sm:$0xf]
        %v366 = vld [vmem:[%s314 + $0x4] sm:$0xf]
        %v367 = vld [vmem:[%s314 + $0x8] sm:$0xf]
        %v368 = vld [vmem:[%s314 + $0xc] sm:$0xf]
        %v369 = vld [vmem:[%s314 + $0x10] sm:$0xf]
        %v370 = vld [vmem:[%s314 + $0x14] sm:$0xf]
        %v371 = vld [vmem:[%s314 + $0x18] sm:$0xf]
        %v372 = vld [vmem:[%s314 + $0x1c] sm:$0xf]
        %v373 = vld [vmem:[%s314 + $0x20] sm:$0xf]
        %v374 = vld [vmem:[%s314 + $0x24] sm:$0xf]
        %v375 = vld [vmem:[%s314 + $0x28] sm:$0xf]
        %v376 = vld [vmem:[%s314 + $0x2c] sm:$0xf]
        %v377 = vld [vmem:[%s314 + $0x30] sm:$0xf]
        %v378 = vld [vmem:[%s314 + $0x34] sm:$0xf]
        %v379 = vld [vmem:[%s314 + $0x38] sm:$0xf]
        %v380 = vld [vmem:[%s314 + $0x3c] sm:$0xf]
        %v383 = vunpack.c.l.b16 %v363
        %v384 = vunpack.c.l.b16 %v364
        %v385 = vpack.c.b16 %v384, %v383
        %v403 = vunpack.c.l.b16 %v365
        %v404 = vunpack.c.l.b16 %v366
        %v405 = vunpack.c.l.b16 %v367
        %v406 = vunpack.c.l.b16 %v368
        %v407 = vunpack.c.l.b16 %v369
        %v408 = vunpack.c.l.b16 %v370
        %v409 = vunpack.c.l.b16 %v371
        %v410 = vunpack.c.l.b16 %v372
        %v411 = vunpack.c.l.b16 %v373
        %v412 = vunpack.c.l.b16 %v374
        %v413 = vunpack.c.l.b16 %v375
        %v414 = vunpack.c.l.b16 %v376
        %v415 = vunpack.c.l.b16 %v377
        %v416 = vunpack.c.l.b16 %v378
        %v417 = vunpack.c.l.b16 %v379
        %v418 = vunpack.c.l.b16 %v380
        %v419 = vpack.c.b16 %v404, %v403
        %v420 = vpack.c.b16 %v406, %v405
        %v421 = vpack.c.b16 %v408, %v407
        %v422 = vpack.c.b16 %v410, %v409
        %v423 = vpack.c.b16 %v412, %v411
        %v424 = vpack.c.b16 %v414, %v413
        %v425 = vpack.c.b16 %v416, %v415
        %v426 = vpack.c.b16 %v418, %v417
        %435 = vmatprep.subr.bf16.mxu0 0
        %436 = vmatpush1.bf16.msra.mxu0 %v426
        %437 = vmatprep.subr.bf16.mxu0 0
        %438 = vmatpush1.bf16.msra.mxu0 %v425
        %439 = vmatprep.subr.bf16.mxu0 0
        %440 = vmatpush1.bf16.msra.mxu0 %v424
        %441 = vmatprep.subr.bf16.mxu0 0
        %442 = vmatpush1.bf16.msra.mxu0 %v423
        %443 = vmatprep.subr.bf16.mxu0 0
        %444 = vmatpush1.bf16.msra.mxu0 %v422
        %445 = vmatprep.subr.bf16.mxu0 0
        %446 = vmatpush1.bf16.msra.mxu0 %v421
        %447 = vmatprep.subr.bf16.mxu0 0
        %448 = vmatpush1.bf16.msra.mxu0 %v420
        %449 = vmatprep.subr.bf16.mxu0 0
        %450 = vmatpush1.bf16.msra.mxu0 %v419
        %451 = vmatprep.subr.bf16.mxu0 0
        %452 = vmatpush2.bf16.msra.mxu0 0
        %453 = vmatprep.subr.bf16.mxu0 0
        %454 = vmatpush2.bf16.msra.mxu0 0
        %455 = vmatprep.subr.bf16.mxu0 0
        %456 = vmatpush2.bf16.msra.mxu0 0
        %457 = vmatprep.subr.bf16.mxu0 0
        %458 = vmatpush2.bf16.msra.mxu0 0
        %459 = vmatprep.subr.bf16.mxu0 0
        %460 = vmatpush2.bf16.msra.mxu0 0
        %461 = vmatprep.subr.bf16.mxu0 0
        %462 = vmatpush2.bf16.msra.mxu0 0
        %463 = vmatprep.subr.bf16.mxu0 0
        %464 = vmatpush2.bf16.msra.mxu0 0
        %465 = vmatprep.subr.bf16.mxu0 0
        %466 = vmatpush2.bf16.msra.mxu0 0
        %467 = vmatprep.mubr.bf16.mxu0 0
        %468 = vmatmul.mubr.bf16.gmra.mxu0 %v385
        %v469 = vpop.f32.mrf.mxu0
        %v470 = vadd.f32 0.0, %v469
        %v471 = vpop.f32.mrf.mxu0
        %v472 = vpop.f32.mrf.mxu0
        %v473 = vadd.f32 0.0, %v472
        %v474 = vpop.f32.mrf.mxu0
        %475 = vdwg.mxu0
        %v476 = vadd.f32 %v361, %v470
        %v477 = vadd.f32 %v362, %v473
        %478 = vst [vmem:[#allocation2] sm:$0xff] %v476
        %479 = vst [vmem:[#allocation2 + $0x8] sm:$0xff] %v477
        %p480 = scmp.eq.s32.totalorder %s26, 1
        // Predicated region
        $region69: #{tpu_custom_call.1} parent=47 // pred_check
          %p481 = pneg %p480
        $region70: #{tpu_custom_call.1} parent=47 // pred_check_branch
          %483 = sbr.rel (%p481) target = $region72
        $region71: #{tpu_custom_call.1} parent=47 // pred_region
          %v484 = vlaneseq
          %v485 = vshrl.u32 %v484, 7
          %v486 = vadd.s32 %v485, 8
          %vm487 = vcmp.lt.s32.totalorder %v485, 6
          %vm488 = vcmp.lt.s32.totalorder %v486, 6
          %v489 = vsel %vm487, 1, 0
          %v490 = vsel %vm488, 1, 0
          %v491 = vcvt.s32.f32 %v489
          %v492 = vcvt.s32.f32 %v490
          %v493 = vld [vmem:[#allocation2] sm:$0xff]
          %v494 = vld [vmem:[#allocation2 + $0x8] sm:$0xff]
          %v495 = vld [vmem:[%s2] sm:$0x1]
          %v496 = vld [vmem:[%s3] sm:$0x1]
          %v497 = vadd.f32 %v493, %v494
          %v498 = vrot.slane %v497, 4
          %v499 = vadd.f32 %v497, %v498
          %v500 = vrot.slane %v499, 2
          %v501 = vadd.f32 %v499, %v500
          %v502 = vrot.slane %v501, 1
          %v503 = vadd.f32 %v501, %v502
          %v504 = vmul.f32 %v493, %v493
          %v505 = vmul.f32 %v494, %v494
          %v506 = vadd.f32 %v504, %v505
          %v507 = vrot.slane %v506, 4
          %v508 = vadd.f32 %v506, %v507
          %v509 = vrot.slane %v508, 2
          %v510 = vadd.f32 %v508, %v509
          %v511 = vrot.slane %v510, 1
          %v512 = vadd.f32 %v510, %v511
          %v513 = vmul.f32 %v503, 0.16666667
          %v514 = vmul.f32 %v512, 0.16666667
          %v515 = vmul.f32 %v513, %v513
          %v516 = vsub.f32 %v514, %v515
          %v517 = vmax.f32 %v516, 0.0
          %v518 = vadd.f32 %v517, 1e-05
          %v519 = vrsqrt.pop %v518
          %v520 = vmul.f32 %v495, %v519
          %v521 = vmul.f32 %v513, %v520
          %v522 = vsub.f32 %v496, %v521
          %v524 = vlaneseq
          %v525 = vshrl.u32 %v524, 7
          %v526 = vsub.s32 0, %v525
          %v527 = vrot.slane %v520, %v526
          %v529 = vmul.f32 %v493, %v527
          %v530 = vmul.f32 %v494, %v527
          %v532 = vlaneseq
          %v533 = vshrl.u32 %v532, 7
          %v534 = vsub.s32 0, %v533
          %v535 = vrot.slane %v522, %v534
          %v537 = vadd.f32 %v529, %v535
          %v538 = vadd.f32 %v530, %v535
          %v539 = vmul.f32 %v537, %v491
          %v540 = vmul.f32 %v538, %v492
          %v541 = vmax.f32 %v539, 0.0
          %v542 = vmax.f32 %v540, 0.0
          %v543 = vpack.c.bf16 %v542, %v541
          %v545 = vunpack.c.l.b16 %v543
          %v546 = vunpack.c.h.b16 %v543
          %v547 = vpack.c.b16 %v545, %v545
          %v548 = vpack.c.b16 %v546, %v546
          %551 = vst [vmem:[#allocation3] sm:$0xf] %v547
          %552 = vst [vmem:[#allocation3 + $0x4] sm:$0xf] %v548
          %v553 = vld [vmem:[#allocation3] sm:$0xf]
          %v554 = vld [vmem:[#allocation3 + $0x4] sm:$0xf]
          %v555 = vld [vmem:[#allocation9] sm:$0xf]
          %v556 = vld [vmem:[#allocation9 + $0x4] sm:$0xf]
          %v557 = vld [vmem:[#allocation9 + $0x8] sm:$0xf]
          %v558 = vld [vmem:[#allocation9 + $0xc] sm:$0xf]
          %v559 = vld [vmem:[#allocation9 + $0x10] sm:$0xf]
          %v560 = vld [vmem:[#allocation9 + $0x14] sm:$0xf]
          %v561 = vld [vmem:[#allocation9 + $0x18] sm:$0xf]
          %v562 = vld [vmem:[#allocation9 + $0x1c] sm:$0xf]
          %v563 = vld [vmem:[#allocation9 + $0x20] sm:$0xf]
          %v564 = vld [vmem:[#allocation9 + $0x24] sm:$0xf]
          %v565 = vld [vmem:[#allocation9 + $0x28] sm:$0xf]
          %v566 = vld [vmem:[#allocation9 + $0x2c] sm:$0xf]
          %v567 = vld [vmem:[#allocation9 + $0x30] sm:$0xf]
          %v568 = vld [vmem:[#allocation9 + $0x34] sm:$0xf]
          %v569 = vld [vmem:[#allocation9 + $0x38] sm:$0xf]
          %v570 = vld [vmem:[#allocation9 + $0x3c] sm:$0xf]
          %v573 = vunpack.c.l.b16 %v553
          %v574 = vunpack.c.l.b16 %v554
          %v575 = vpack.c.b16 %v574, %v573
          %v593 = vunpack.c.l.b16 %v555
          %v594 = vunpack.c.l.b16 %v556
          %v595 = vunpack.c.l.b16 %v557
          %v596 = vunpack.c.l.b16 %v558
          %v597 = vunpack.c.l.b16 %v559
          %v598 = vunpack.c.l.b16 %v560
          %v599 = vunpack.c.l.b16 %v561
          %v600 = vunpack.c.l.b16 %v562
          %v601 = vunpack.c.l.b16 %v563
          %v602 = vunpack.c.l.b16 %v564
          %v603 = vunpack.c.l.b16 %v565
          %v604 = vunpack.c.l.b16 %v566
          %v605 = vunpack.c.l.b16 %v567
          %v606 = vunpack.c.l.b16 %v568
          %v607 = vunpack.c.l.b16 %v569
          %v608 = vunpack.c.l.b16 %v570
          %v609 = vpack.c.b16 %v594, %v593
          %v610 = vpack.c.b16 %v596, %v595
          %v611 = vpack.c.b16 %v598, %v597
          %v612 = vpack.c.b16 %v600, %v599
          %v613 = vpack.c.b16 %v602, %v601
          %v614 = vpack.c.b16 %v604, %v603
          %v615 = vpack.c.b16 %v606, %v605
          %v616 = vpack.c.b16 %v608, %v607
          %625 = vmatprep.subr.bf16.mxu0 0
          %626 = vmatpush1.bf16.msra.mxu0 %v616
          %627 = vmatprep.subr.bf16.mxu0 0
          %628 = vmatpush1.bf16.msra.mxu0 %v615
          %629 = vmatprep.subr.bf16.mxu0 0
          %630 = vmatpush1.bf16.msra.mxu0 %v614
          %631 = vmatprep.subr.bf16.mxu0 0
          %632 = vmatpush1.bf16.msra.mxu0 %v613
          %633 = vmatprep.subr.bf16.mxu0 0
          %634 = vmatpush1.bf16.msra.mxu0 %v612
          %635 = vmatprep.subr.bf16.mxu0 0
          %636 = vmatpush1.bf16.msra.mxu0 %v611
          %637 = vmatprep.subr.bf16.mxu0 0
          %638 = vmatpush1.bf16.msra.mxu0 %v610
          %639 = vmatprep.subr.bf16.mxu0 0
          %640 = vmatpush1.bf16.msra.mxu0 %v609
          %641 = vmatprep.subr.bf16.mxu0 0
          %642 = vmatpush2.bf16.msra.mxu0 0
          %643 = vmatprep.subr.bf16.mxu0 0
          %644 = vmatpush2.bf16.msra.mxu0 0
          %645 = vmatprep.subr.bf16.mxu0 0
          %646 = vmatpush2.bf16.msra.mxu0 0
          %647 = vmatprep.subr.bf16.mxu0 0
          %648 = vmatpush2.bf16.msra.mxu0 0
          %649 = vmatprep.subr.bf16.mxu0 0
          %650 = vmatpush2.bf16.msra.mxu0 0
          %651 = vmatprep.subr.bf16.mxu0 0
          %652 = vmatpush2.bf16.msra.mxu0 0
          %653 = vmatprep.subr.bf16.mxu0 0
          %654 = vmatpush2.bf16.msra.mxu0 0
          %655 = vmatprep.subr.bf16.mxu0 0
          %656 = vmatpush2.bf16.msra.mxu0 0
          %657 = vmatprep.mubr.bf16.mxu0 0
          %658 = vmatmul.mubr.bf16.gmra.mxu0 %v575
          %v659 = vpop.f32.mrf.mxu0
          %v660 = vadd.f32 0.0, %v659
          %v661 = vpop.f32.mrf.mxu0
          %v662 = vpop.f32.mrf.mxu0
          %v663 = vadd.f32 0.0, %v662
          %v664 = vpop.f32.mrf.mxu0
          %665 = vdwg.mxu0
          %v666 = vadd.f32 %v660, %v663
          %v667 = vrot.slane %v666, 4
          %v668 = vadd.f32 %v666, %v667
          %v669 = vrot.slane %v668, 2
          %v670 = vadd.f32 %v668, %v669
          %v671 = vrot.slane %v670, 1
          %v672 = vadd.f32 %v670, %v671
          %v673 = vmul.f32 %v660, %v660
          %v674 = vmul.f32 %v663, %v663
          %v675 = vadd.f32 %v673, %v674
          %v676 = vrot.slane %v675, 4
          %v677 = vadd.f32 %v675, %v676
          %v678 = vrot.slane %v677, 2
          %v679 = vadd.f32 %v677, %v678
          %v680 = vrot.slane %v679, 1
          %v681 = vadd.f32 %v679, %v680
          %v682 = vmul.f32 %v672, 0.16666667
          %v683 = vmul.f32 %v681, 0.16666667
          %v684 = vmul.f32 %v682, %v682
          %v685 = vsub.f32 %v683, %v684
          %v686 = vmax.f32 %v685, 0.0
          %v687 = vadd.f32 %v686, 1e-05
          %v688 = vrsqrt.pop %v687
          %v689 = vmul.f32 %v682, %v688
          %v690 = vsub.f32 0.0, %v689
          %v691 = vmul.f32 %v660, %v688
          %v692 = vmul.f32 %v663, %v688
          %v693 = vadd.f32 %v691, %v690
          %v694 = vadd.f32 %v692, %v690
          %v695 = vmul.f32 %v693, %v491
          %v696 = vmul.f32 %v694, %v492
          %v697 = vmax.f32 %v695, 0.0
          %v698 = vmax.f32 %v696, 0.0
          %v699 = vpack.c.bf16 %v698, %v697
          %v701 = vunpack.c.l.b16 %v699
          %v702 = vunpack.c.h.b16 %v699
          %v703 = vpack.c.b16 %v701, %v701
          %v704 = vpack.c.b16 %v702, %v702
          %707 = vst [vmem:[#allocation3] sm:$0xf] %v703
          %708 = vst [vmem:[#allocation3 + $0x4] sm:$0xf] %v704
          %v709 = vld [vmem:[#allocation3] sm:$0xf]
          %v710 = vld [vmem:[#allocation3 + $0x4] sm:$0xf]
          %v711 = vld [vmem:[#allocation10] sm:$0xff]
          %v712 = vld [vmem:[#allocation10 + $0x8] sm:$0xff]
          %v713 = vld [vmem:[#allocation10 + $0x10] sm:$0xff]
          %v714 = vld [vmem:[#allocation10 + $0x18] sm:$0xff]
          %v715 = vld [vmem:[#allocation10 + $0x20] sm:$0xff]
          %v716 = vld [vmem:[#allocation10 + $0x28] sm:$0xff]
          %v717 = vld [vmem:[#allocation10 + $0x30] sm:$0xff]
          %v718 = vld [vmem:[#allocation10 + $0x38] sm:$0xff]
          %v719 = vld [vmem:[#allocation10 + $0x40] sm:$0xff]
          %v720 = vld [vmem:[#allocation10 + $0x48] sm:$0xff]
          %v721 = vld [vmem:[#allocation10 + $0x50] sm:$0xff]
          %v722 = vld [vmem:[#allocation10 + $0x58] sm:$0xff]
          %v723 = vld [vmem:[#allocation10 + $0x60] sm:$0xff]
          %v724 = vld [vmem:[#allocation10 + $0x68] sm:$0xff]
          %v725 = vld [vmem:[#allocation10 + $0x70] sm:$0xff]
          %v726 = vld [vmem:[#allocation10 + $0x78] sm:$0xff]
          %v727 = vld [vmem:[#allocation10 + $0x80] sm:$0xff]
          %v728 = vld [vmem:[#allocation10 + $0x88] sm:$0xff]
          %v729 = vld [vmem:[#allocation10 + $0x90] sm:$0xff]
          %v730 = vld [vmem:[#allocation10 + $0x98] sm:$0xff]
          %v731 = vld [vmem:[#allocation10 + $0xa0] sm:$0xff]
          %v732 = vld [vmem:[#allocation10 + $0xa8] sm:$0xff]
          %v733 = vld [vmem:[#allocation10 + $0xb0] sm:$0xff]
          %v734 = vld [vmem:[#allocation10 + $0xb8] sm:$0xff]
          %v735 = vld [vmem:[#allocation10 + $0xc0] sm:$0xff]
          %v736 = vld [vmem:[#allocation10 + $0xc8] sm:$0xff]
          %v737 = vld [vmem:[#allocation10 + $0xd0] sm:$0xff]
          %v738 = vld [vmem:[#allocation10 + $0xd8] sm:$0xff]
          %v739 = vld [vmem:[#allocation10 + $0xe0] sm:$0xff]
          %v740 = vld [vmem:[#allocation10 + $0xe8] sm:$0xff]
          %v741 = vld [vmem:[#allocation10 + $0xf0] sm:$0xff]
          %v742 = vld [vmem:[#allocation10 + $0xf8] sm:$0xff]
          %v745 = vunpack.c.l.b16 %v709
          %v746 = vunpack.c.l.b16 %v710
          %v747 = vpack.c.b16 %v746, %v745
          %v781 = vunpack.c.l.b16 %v711
          %v782 = vunpack.c.h.b16 %v711
          %v783 = vunpack.c.l.b16 %v712
          %v784 = vunpack.c.h.b16 %v712
          %v785 = vunpack.c.l.b16 %v713
          %v786 = vunpack.c.h.b16 %v713
          %v787 = vunpack.c.l.b16 %v714
          %v788 = vunpack.c.h.b16 %v714
          %v789 = vunpack.c.l.b16 %v715
          %v790 = vunpack.c.h.b16 %v715
          %v791 = vunpack.c.l.b16 %v716
          %v792 = vunpack.c.h.b16 %v716
          %v793 = vunpack.c.l.b16 %v717
          %v794 = vunpack.c.h.b16 %v717
          %v795 = vunpack.c.l.b16 %v718
          %v796 = vunpack.c.h.b16 %v718
          %v797 = vunpack.c.l.b16 %v719
          %v798 = vunpack.c.h.b16 %v719
          %v799 = vunpack.c.l.b16 %v720
          %v800 = vunpack.c.h.b16 %v720
          %v801 = vunpack.c.l.b16 %v721
          %v802 = vunpack.c.h.b16 %v721
          %v803 = vunpack.c.l.b16 %v722
          %v804 = vunpack.c.h.b16 %v722
          %v805 = vunpack.c.l.b16 %v723
          %v806 = vunpack.c.h.b16 %v723
          %v807 = vunpack.c.l.b16 %v724
          %v808 = vunpack.c.h.b16 %v724
          %v809 = vunpack.c.l.b16 %v725
          %v810 = vunpack.c.h.b16 %v725
          %v811 = vunpack.c.l.b16 %v726
          %v812 = vunpack.c.h.b16 %v726
          %v813 = vunpack.c.l.b16 %v727
          %v814 = vunpack.c.h.b16 %v727
          %v815 = vunpack.c.l.b16 %v728
          %v816 = vunpack.c.h.b16 %v728
          %v817 = vunpack.c.l.b16 %v729
          %v818 = vunpack.c.h.b16 %v729
          %v819 = vunpack.c.l.b16 %v730
          %v820 = vunpack.c.h.b16 %v730
          %v821 = vunpack.c.l.b16 %v731
          %v822 = vunpack.c.h.b16 %v731
          %v823 = vunpack.c.l.b16 %v732
          %v824 = vunpack.c.h.b16 %v732
          %v825 = vunpack.c.l.b16 %v733
          %v826 = vunpack.c.h.b16 %v733
          %v827 = vunpack.c.l.b16 %v734
          %v828 = vunpack.c.h.b16 %v734
          %v829 = vunpack.c.l.b16 %v735
          %v830 = vunpack.c.h.b16 %v735
          %v831 = vunpack.c.l.b16 %v736
          %v832 = vunpack.c.h.b16 %v736
          %v833 = vunpack.c.l.b16 %v737
          %v834 = vunpack.c.h.b16 %v737
          %v835 = vunpack.c.l.b16 %v738
          %v836 = vunpack.c.h.b16 %v738
          %v837 = vunpack.c.l.b16 %v739
          %v838 = vunpack.c.h.b16 %v739
          %v839 = vunpack.c.l.b16 %v740
          %v840 = vunpack.c.h.b16 %v740
          %v841 = vunpack.c.l.b16 %v741
          %v842 = vunpack.c.h.b16 %v741
          %v843 = vunpack.c.l.b16 %v742
          %v844 = vunpack.c.h.b16 %v742
          %v845 = vpack.c.b16 %v785, %v781
          %v846 = vpack.c.b16 %v786, %v782
          %v847 = vpack.c.b16 %v787, %v783
          %v848 = vpack.c.b16 %v788, %v784
          %v849 = vpack.c.b16 %v793, %v789
          %v850 = vpack.c.b16 %v794, %v790
          %v851 = vpack.c.b16 %v795, %v791
          %v852 = vpack.c.b16 %v796, %v792
          %v853 = vpack.c.b16 %v801, %v797
          %v854 = vpack.c.b16 %v802, %v798
          %v855 = vpack.c.b16 %v803, %v799
          %v856 = vpack.c.b16 %v804, %v800
          %v857 = vpack.c.b16 %v809, %v805
          %v858 = vpack.c.b16 %v810, %v806
          %v859 = vpack.c.b16 %v811, %v807
          %v860 = vpack.c.b16 %v812, %v808
          %v861 = vpack.c.b16 %v817, %v813
          %v862 = vpack.c.b16 %v818, %v814
          %v863 = vpack.c.b16 %v819, %v815
          %v864 = vpack.c.b16 %v820, %v816
          %v865 = vpack.c.b16 %v825, %v821
          %v866 = vpack.c.b16 %v826, %v822
          %v867 = vpack.c.b16 %v827, %v823
          %v868 = vpack.c.b16 %v828, %v824
          %v869 = vpack.c.b16 %v833, %v829
          %v870 = vpack.c.b16 %v834, %v830
          %v871 = vpack.c.b16 %v835, %v831
          %v872 = vpack.c.b16 %v836, %v832
          %v873 = vpack.c.b16 %v841, %v837
          %v874 = vpack.c.b16 %v842, %v838
          %v875 = vpack.c.b16 %v843, %v839
          %v876 = vpack.c.b16 %v844, %v840
          %909 = vmatprep.subr.bf16.mxu0 %v874
          %910 = vmatpush1.bf16.msra.mxu0 %v873
          %911 = vmatprep.subr.bf16.mxu0 %v870
          %912 = vmatpush1.bf16.msra.mxu0 %v869
          %913 = vmatprep.subr.bf16.mxu0 %v866
          %914 = vmatpush1.bf16.msra.mxu0 %v865
          %915 = vmatprep.subr.bf16.mxu0 %v862
          %916 = vmatpush1.bf16.msra.mxu0 %v861
          %917 = vmatprep.subr.bf16.mxu0 %v858
          %918 = vmatpush1.bf16.msra.mxu0 %v857
          %919 = vmatprep.subr.bf16.mxu0 %v854
          %920 = vmatpush1.bf16.msra.mxu0 %v853
          %921 = vmatprep.subr.bf16.mxu0 %v850
          %922 = vmatpush1.bf16.msra.mxu0 %v849
          %923 = vmatprep.subr.bf16.mxu0 %v846
          %924 = vmatpush1.bf16.msra.mxu0 %v845
          %925 = vmatprep.subr.bf16.mxu0 0
          %926 = vmatpush2.bf16.msra.mxu0 0
          %927 = vmatprep.subr.bf16.mxu0 0
          %928 = vmatpush2.bf16.msra.mxu0 0
          %929 = vmatprep.subr.bf16.mxu0 0
          %930 = vmatpush2.bf16.msra.mxu0 0
          %931 = vmatprep.subr.bf16.mxu0 0
          %932 = vmatpush2.bf16.msra.mxu0 0
          %933 = vmatprep.subr.bf16.mxu0 0
          %934 = vmatpush2.bf16.msra.mxu0 0
          %935 = vmatprep.subr.bf16.mxu0 0
          %936 = vmatpush2.bf16.msra.mxu0 0
          %937 = vmatprep.subr.bf16.mxu0 0
          %938 = vmatpush2.bf16.msra.mxu0 0
          %939 = vmatprep.subr.bf16.mxu0 0
          %940 = vmatpush2.bf16.msra.mxu0 0
          %941 = vmatprep.mubr.bf16.mxu0 0
          %942 = vmatmul.mubr.bf16.gmra.mxu0 %v747
          %v943 = vpop.f32.mrf.mxu0
          %v944 = vadd.f32 0.0, %v943
          %v945 = vpop.f32.mrf.mxu0
          %v946 = vadd.f32 0.0, %v945
          %v947 = vpop.f32.mrf.mxu0
          %v948 = vadd.f32 0.0, %v947
          %v949 = vpop.f32.mrf.mxu0
          %v950 = vadd.f32 0.0, %v949
          %951 = vdwg.mxu0
          %952 = vmatprep.subr.bf16.mxu0 %v876
          %953 = vmatpush1.bf16.msra.mxu0 %v875
          %954 = vmatprep.subr.bf16.mxu0 %v872
          %955 = vmatpush1.bf16.msra.mxu0 %v871
          %956 = vmatprep.subr.bf16.mxu0 %v868
          %957 = vmatpush1.bf16.msra.mxu0 %v867
          %958 = vmatprep.subr.bf16.mxu0 %v864
          %959 = vmatpush1.bf16.msra.mxu0 %v863
          %960 = vmatprep.subr.bf16.mxu0 %v860
          %961 = vmatpush1.bf16.msra.mxu0 %v859
          %962 = vmatprep.subr.bf16.mxu0 %v856
          %963 = vmatpush1.bf16.msra.mxu0 %v855
          %964 = vmatprep.subr.bf16.mxu0 %v852
          %965 = vmatpush1.bf16.msra.mxu0 %v851
          %966 = vmatprep.subr.bf16.mxu0 %v848
          %967 = vmatpush1.bf16.msra.mxu0 %v847
          %968 = vmatprep.subr.bf16.mxu0 0
          %969 = vmatpush2.bf16.msra.mxu0 0
          %970 = vmatprep.subr.bf16.mxu0 0
          %971 = vmatpush2.bf16.msra.mxu0 0
          %972 = vmatprep.subr.bf16.mxu0 0
          %973 = vmatpush2.bf16.msra.mxu0 0
          %974 = vmatprep.subr.bf16.mxu0 0
          %975 = vmatpush2.bf16.msra.mxu0 0
          %976 = vmatprep.subr.bf16.mxu0 0
          %977 = vmatpush2.bf16.msra.mxu0 0
          %978 = vmatprep.subr.bf16.mxu0 0
          %979 = vmatpush2.bf16.msra.mxu0 0
          %980 = vmatprep.subr.bf16.mxu0 0
          %981 = vmatpush2.bf16.msra.mxu0 0
          %982 = vmatprep.subr.bf16.mxu0 0
          %983 = vmatpush2.bf16.msra.mxu0 0
          %984 = vmatprep.mubr.bf16.mxu0 0
          %985 = vmatmul.mubr.bf16.gmra.mxu0 %v747
          %v986 = vpop.f32.mrf.mxu0
          %v987 = vadd.f32 0.0, %v986
          %v988 = vpop.f32.mrf.mxu0
          %v989 = vadd.f32 0.0, %v988
          %v990 = vpop.f32.mrf.mxu0
          %v991 = vadd.f32 0.0, %v990
          %v992 = vpop.f32.mrf.mxu0
          %v993 = vadd.f32 0.0, %v992
          %994 = vdwg.mxu0
          %v995 = vld [vmem:[%s6] sm:$0xf]
          %v996 = vadd.f32 %v944, %v948
          %v997 = vrot.slane %v996, 4
          %v998 = vadd.f32 %v996, %v997
          %v999 = vrot.slane %v998, 2
          %v1000 = vadd.f32 %v998, %v999
          %v1001 = vrot.slane %v1000, 1
          %v1002 = vadd.f32 %v1000, %v1001
          %v1003 = vadd.f32 %v946, %v950
          %v1004 = vrot.slane %v1003, 4
          %v1005 = vadd.f32 %v1003, %v1004
          %v1006 = vrot.slane %v1005, 2
          %v1007 = vadd.f32 %v1005, %v1006
          %v1008 = vrot.slane %v1007, 1
          %v1009 = vadd.f32 %v1007, %v1008
          %v1010 = vadd.f32 %v987, %v991
          %v1011 = vrot.slane %v1010, 4
          %v1012 = vadd.f32 %v1010, %v1011
          %v1013 = vrot.slane %v1012, 2
          %v1014 = vadd.f32 %v1012, %v1013
          %v1015 = vrot.slane %v1014, 1
          %v1016 = vadd.f32 %v1014, %v1015
          %v1017 = vadd.f32 %v989, %v993
          %v1018 = vrot.slane %v1017, 4
          %v1019 = vadd.f32 %v1017, %v1018
          %v1020 = vrot.slane %v1019, 2
          %v1021 = vadd.f32 %v1019, %v1020
          %v1022 = vrot.slane %v1021, 1
          %v1023 = vadd.f32 %v1021, %v1022
          %v1024 = vmul.f32 %v944, %v944
          %v1025 = vmul.f32 %v946, %v946
          %v1026 = vmul.f32 %v987, %v987
          %v1027 = vmul.f32 %v989, %v989
          %v1028 = vmul.f32 %v948, %v948
          %v1029 = vmul.f32 %v950, %v950
          %v1030 = vmul.f32 %v991, %v991
          %v1031 = vmul.f32 %v993, %v993
          %v1032 = vadd.f32 %v1024, %v1028
          %v1033 = vrot.slane %v1032, 4
          %v1034 = vadd.f32 %v1032, %v1033
          %v1035 = vrot.slane %v1034, 2
          %v1036 = vadd.f32 %v1034, %v1035
          %v1037 = vrot.slane %v1036, 1
          %v1038 = vadd.f32 %v1036, %v1037
          %v1039 = vadd.f32 %v1025, %v1029
          %v1040 = vrot.slane %v1039, 4
          %v1041 = vadd.f32 %v1039, %v1040
          %v1042 = vrot.slane %v1041, 2
          %v1043 = vadd.f32 %v1041, %v1042
          %v1044 = vrot.slane %v1043, 1
          %v1045 = vadd.f32 %v1043, %v1044
          %v1046 = vadd.f32 %v1026, %v1030
          %v1047 = vrot.slane %v1046, 4
          %v1048 = vadd.f32 %v1046, %v1047
          %v1049 = vrot.slane %v1048, 2
          %v1050 = vadd.f32 %v1048, %v1049
          %v1051 = vrot.slane %v1050, 1
          %v1052 = vadd.f32 %v1050, %v1051
          %v1053 = vadd.f32 %v1027, %v1031
          %v1054 = vrot.slane %v1053, 4
          %v1055 = vadd.f32 %v1053, %v1054
          %v1056 = vrot.slane %v1055, 2
          %v1057 = vadd.f32 %v1055, %v1056
          %v1058 = vrot.slane %v1057, 1
          %v1059 = vadd.f32 %v1057, %v1058
          %v1060 = vmul.f32 %v1002, 0.16666667
          %v1061 = vmul.f32 %v1009, 0.16666667
          %v1062 = vmul.f32 %v1016, 0.16666667
          %v1063 = vmul.f32 %v1023, 0.16666667
          %v1064 = vmul.f32 %v1038, 0.16666667
          %v1065 = vmul.f32 %v1045, 0.16666667
          %v1066 = vmul.f32 %v1052, 0.16666667
          %v1067 = vmul.f32 %v1059, 0.16666667
          %v1068 = vmul.f32 %v1060, %v1060
          %v1069 = vmul.f32 %v1061, %v1061
          %v1070 = vmul.f32 %v1062, %v1062
          %v1071 = vmul.f32 %v1063, %v1063
          %v1072 = vsub.f32 %v1064, %v1068
          %v1073 = vsub.f32 %v1065, %v1069
          %v1074 = vsub.f32 %v1066, %v1070
          %v1075 = vsub.f32 %v1067, %v1071
          %v1076 = vmax.f32 %v1072, 0.0
          %v1077 = vmax.f32 %v1073, 0.0
          %v1078 = vmax.f32 %v1074, 0.0
          %v1079 = vmax.f32 %v1075, 0.0
          %v1080 = vadd.f32 %v1076, 1e-05
          %v1081 = vadd.f32 %v1077, 1e-05
          %v1082 = vadd.f32 %v1078, 1e-05
          %v1083 = vadd.f32 %v1079, 1e-05
          %v1084 = vrsqrt.pop %v1080
          %v1085 = vrsqrt.pop %v1081
          %v1086 = vrsqrt.pop %v1082
          %v1087 = vrsqrt.pop %v1083
          %v1088 = vmul.f32 %v1060, %v1084
          %v1089 = vmul.f32 %v1061, %v1085
          %v1090 = vmul.f32 %v1062, %v1086
          %v1091 = vmul.f32 %v1063, %v1087
          %v1096 = vcombine.low %v1088, %v1089
          %v1097 = vcombine.low %v1090, %v1091
          %v1099 = vunpack.c.l.s4 1966171168
          %v1100 = vunpack.c.0.s8 %v1099
          %v1101 = vlaneseq
          %v1102 = vshrl.u32 %v1101, 7
          %v1103 = vsub.s32 %v1100, %v1102
          %v1104 = vrot.slane %v1096, %v1103
          %v1106 = vunpack.c.l.s4 1966171168
          %v1107 = vunpack.c.0.s8 %v1106
          %v1108 = vlaneseq
          %v1109 = vshrl.u32 %v1108, 7
          %v1110 = vsub.s32 %v1107, %v1109
          %v1111 = vrot.slane %v1097, %v1110
          %v1112 = vcombine.low %v1104, %v1111
          %v1114 = vunpack.c.l.s4 1966171168
          %v1115 = vunpack.c.0.s8 %v1114
          %v1116 = vlaneseq
          %v1117 = vshrl.u32 %v1116, 7
          %v1118 = vsub.s32 %v1115, %v1117
          %v1119 = vrot.slane %v1112, %v1118
          %v1121 = vsub.f32 %v995, %v1119
          %v1122 = vmul.f32 %v944, %v1084
          %v1123 = vmul.f32 %v946, %v1085
          %v1124 = vmul.f32 %v987, %v1086
          %v1125 = vmul.f32 %v989, %v1087
          %v1126 = vmul.f32 %v948, %v1084
          %v1127 = vmul.f32 %v950, %v1085
          %v1128 = vmul.f32 %v991, %v1086
          %v1129 = vmul.f32 %v993, %v1087
          %v1131 = vlaneseq
          %v1132 = vshrl.u32 %v1131, 7
          %v1133 = vsub.s32 0, %v1132
          %v1134 = vrot.slane %v1121, %v1133
          %v1135 = vlaneseq
          %v1136 = vshrl.u32 %v1135, 7
          %v1137 = vsub.s32 1, %v1136
          %v1138 = vrot.slane %v1121, %v1137
          %v1139 = vlaneseq
          %v1140 = vshrl.u32 %v1139, 7
          %v1141 = vsub.s32 2, %v1140
          %v1142 = vrot.slane %v1121, %v1141
          %v1143 = vlaneseq
          %v1144 = vshrl.u32 %v1143, 7
          %v1145 = vsub.s32 3, %v1144
          %v1146 = vrot.slane %v1121, %v1145
          %v1151 = vadd.f32 %v1122, %v1134
          %v1152 = vadd.f32 %v1123, %v1138
          %v1153 = vadd.f32 %v1124, %v1142
          %v1154 = vadd.f32 %v1125, %v1146
          %v1155 = vadd.f32 %v1126, %v1134
          %v1156 = vadd.f32 %v1127, %v1138
          %v1157 = vadd.f32 %v1128, %v1142
          %v1158 = vadd.f32 %v1129, %v1146
          %v1159 = vmul.f32 %v1151, %v1151
          %v1160 = vmul.f32 %v1152, %v1152
          %v1161 = vmul.f32 %v1153, %v1153
          %v1162 = vmul.f32 %v1154, %v1154
          %v1163 = vmul.f32 %v1155, %v1155
          %v1164 = vmul.f32 %v1156, %v1156
          %v1165 = vmul.f32 %v1157, %v1157
          %v1166 = vmul.f32 %v1158, %v1158
          %v1167 = vadd.f32 %v1159, %v1160
          %v1168 = vadd.f32 %v1167, %v1161
          %v1169 = vadd.f32 %v1168, %v1162
          %1170 = vadd.xlane.f32.xlu0 %v1169
          %v1171 = vpop.xlane.xlu0 %1170
          %v1172 = vadd.f32 %v1163, %v1164
          %v1173 = vadd.f32 %v1172, %v1165
          %v1174 = vadd.f32 %v1173, %v1166
          %1175 = vadd.xlane.f32.xlu0 %v1174
          %v1176 = vpop.xlane.xlu0 %1175
          %v1177 = vmax.f32 %v1171, 1e-24
          %v1178 = vmax.f32 %v1176, 1e-24
          %v1179 = vrsqrt.pop %v1177
          %v1180 = vrsqrt.pop %v1178
          %v1181 = vmul.f32 %v1151, %v1179
          %v1182 = vmul.f32 %v1152, %v1179
          %v1183 = vmul.f32 %v1153, %v1179
          %v1184 = vmul.f32 %v1154, %v1179
          %v1185 = vmul.f32 %v1155, %v1180
          %v1186 = vmul.f32 %v1156, %v1180
          %v1187 = vmul.f32 %v1157, %v1180
          %v1188 = vmul.f32 %v1158, %v1180
          %1189 = vst [vmem:[#allocation12] sm:$0xff] %v1181
          %1190 = vst [vmem:[#allocation12 + $0x8] sm:$0xff] %v1182
          %1191 = vst [vmem:[#allocation12 + $0x10] sm:$0xff] %v1183
          %1192 = vst [vmem:[#allocation12 + $0x18] sm:$0xff] %v1184
          %1193 = vst [vmem:[#allocation12 + $0x20] sm:$0xff] %v1185
          %1194 = vst [vmem:[#allocation12 + $0x28] sm:$0xff] %v1186
          %1195 = vst [vmem:[#allocation12 + $0x30] sm:$0xff] %v1187
          %1196 = vst [vmem:[#allocation12 + $0x38] sm:$0xff] %v1188
        $region72: #{tpu_custom_call.1} parent=47 // pred_fallthru
          _
        // Predicated region
        $region73: #{tpu_custom_call.1} parent=47 // pred_check
          %p1197 = pneg %p196
        $region74: #{tpu_custom_call.1} parent=47 // pred_check_branch
          %1199 = sbr.rel (%p1197) target = $region76
        $region75: #{tpu_custom_call.1} parent=47 // pred_region
          %s1201 = ssub.s32 1024, 1024
          %1202 = vsyncadd [#allocation6], %s1201
          %s1203 = sshll.u32 [#allocation12], 4
          %s1204 = int_to_ptr.vmem [resolvable:$true] %s1203
          %1209 = dma.vmem_to_hbm [thread:$0]  %s1204, 1024, %s7, [#allocation6], 512, 512, 32
        $region76: #{tpu_custom_call.1} parent=47 // pred_fallthru
          _
        // Predicated region
        $region77: #{tpu_custom_call.1} parent=47 // pred_check
          %p1210 = pneg %p196
        $region78: #{tpu_custom_call.1} parent=47 // pred_check_branch
          %1212 = sbr.rel (%p1210) target = $region80
        $region79: #{tpu_custom_call.1} parent=47 // pred_region
          %1213 = dma.done [#allocation6], 1024
        $region80: #{tpu_custom_call.1} parent=47 // pred_fallthru
          _
      $region48: #{tpu_custom_call.1} parent=5 // pred_fallthru
        _
      %p1214 = scmp.le.s32.totalorder 2, %s21
      // Predicated region
      $region81: #{tpu_custom_call.1} parent=5 // pred_check
        %p1215 = pneg %p1214
      $region82: #{tpu_custom_call.1} parent=5 // pred_check_branch
        %1217 = sbr.rel (%p1215) target = $region84
      $region83: #{tpu_custom_call.1} parent=5 // pred_region
        %s1218 = ssub.s32 %s21, 2
      $region84: #{tpu_custom_call.1} parent=5 // pred_fallthru
        _
    $region6: #{tpu_custom_call.1} parent=1 // loop_footer
      %s25 = sadd.s32 1, %s21
    $region7: #{tpu_custom_call.1} parent=1 // loop_footer_branch
      %20 = sbr.rel target = $region3
    $region8: #{tpu_custom_call.1} parent=1 // loop_exit
      _
    %1219 = vsyncpa [#allocation5], 1
    %s1220 = scalar_lea.sflag [#allocation5], 1
    %1221 = vsyncpa %s1220, 1
    %1222 = vsyncpa [#allocation8], 1
    %s1223 = scalar_lea.sflag [#allocation8], 1
    %1224 = vsyncpa %s1223, 1
    %1225 = vsyncpa [#allocation11], 1
    %1226 = vsyncpa [#allocation6], 1
    %s1227 = scalar_lea.sflag [#allocation6], 1
    %1228 = vsyncpa %s1227, 1

// kernel: tpu_custom_call.1
$region0: #{tpu_custom_call.1}
  #allocation0 [shape = 'u32[]', space=smem, size = 0x4, offset = 0x4, fixed_abs, tag = 'smem constant byte address 0x4 - core index']
  #allocation1 [shape = 'u32[144,128]{1,0:T(1,128)}', space=vmem, size = 0x12000, scoped, tag = 'internal scratch']
  #allocation2 [shape = 'f32[16,128]{1,0:T(8,128)}', space=vmem, size = 0x2000, scoped, tag = 'scratch operand']
  #allocation3 [shape = 'bf16[16,128]{1,0:T(8,128)(2,1)}', space=vmem, size = 0x1000, scoped, tag = 'scratch operand']
  %s0 = inlined_call_operand.hbm [shape: bf16[16,256], index: 0, kind: input, shape index: {}]
  %s1 = inlined_call_operand.hbm [shape: bf16[256,128], index: 1, kind: input, shape index: {}]
  %s2 = inlined_call_operand.vmem [shape: f32[1,128], index: 2, kind: input, shape index: {}]
  %s3 = inlined_call_operand.vmem [shape: f32[1,128], index: 3, kind: input, shape index: {}]
  %s4 = inlined_call_operand.hbm [shape: bf16[128,128], index: 4, kind: input, shape index: {}]
  %s5 = inlined_call_operand.hbm [shape: bf16[128,512], index: 5, kind: input, shape index: {}]
  %s6 = inlined_call_operand.vmem [shape: f32[1,512], index: 6, kind: input, shape index: {}]
  %s7 = inlined_call_operand.hbm [shape: f32[16,512], index: 7, kind: output, shape index: {}]
  %s8 = sld [smem:[#allocation0]]
  $region85: #{tpu_custom_call.1} parent=0
    _
  %s10 = ssub.s32 1, %s8
  %s11 = scalar_select 0, %s10, %s8
  $region1: #{tpu_custom_call.1} parent=0
    #allocation4 [shape = 'u8[8192]{0}', space=vmem, size = 0x2000, scoped, tag = 'input window, operand 0']
    #allocation5 [shape = 's32[2]{0}', space=sflag, size = 0x8, scoped, tag = 'scoped memory for tpu_custom_call.1']
    #allocation6 [shape = 's32[2]{0}', space=sflag, size = 0x8, scoped, tag = 'scoped memory for tpu_custom_call.1']
    #allocation7 [shape = 'u8[65536]{0}', space=vmem, size = 0x10000, scoped, tag = 'input window, operand 1']
    #allocation8 [shape = 's32[2]{0}', space=sflag, size = 0x8, scoped, tag = 'scoped memory for tpu_custom_call.1']
    #allocation9 [shape = 'u8[32768]{0}', space=vmem, size = 0x8000, scoped, tag = 'input window, operand 4, single buffered']
    #allocation10 [shape = 'u8[131072]{0}', space=vmem, size = 0x20000, scoped, tag = 'input window, operand 5, single buffered']
    #allocation11 [shape = 's32[1]{0}', space=sflag, size = 0x4, scoped, tag = 'scoped memory for tpu_custom_call.1']
    #allocation12 [shape = 'u8[32768]{0}', space=vmem, size = 0x8000, scoped, tag = 'output window, operand 0, single buffered']
    %12 = vsyncpa [#allocation5], 0
    %s13 = scalar_lea.sflag [#allocation5], 1
    %14 = vsyncpa %s13, 0
    %15 = vsyncpa [#allocation8], 0
    %s16 = scalar_lea.sflag [#allocation8], 1
    %17 = vsyncpa %s16, 0
    %18 = vsyncpa [#allocation11], 0
    %19 = vsyncpa [#allocation6], 0
    loop: start=0, step=1, limit=4
    $region2: #{tpu_custom_call.1} parent=1 // loop_pre_header
      _
    $region3: #{tpu_custom_call.1} parent=1 // loop_header
      %s21 = sphi 0, %s25
      %p22 = scmp.ge.s32.totalorder %s21, 4
      %s31 = sphi 0, %s33
      %s34 = sphi 0, %s31
      %s35 = sphi 0, %s34
      %s51 = sphi 0, %s35
      %s57 = sphi 0, %s59
      %s60 = sphi 0, %s57
      %s61 = sphi 0, %s60
      %s77 = sphi 0, %s61
      %s81 = sphi 0, %s81
      %s83 = sphi 0, %s81
      %s84 = sphi 0, %s83
      %s98 = sphi 0, %s84
      %s102 = sphi 0, %s102
      %s104 = sphi 0, %s102
      %s105 = sphi 0, %s104
      %s119 = sphi 0, %s105
      %s123 = sphi 0, %s123
      %s125 = sphi 0, %s123
      %s126 = sphi 0, %s125
      %s140 = sphi 0, %s126
      %s144 = sphi 0, %s144
      %s146 = sphi 0, %s144
      %s147 = sphi 0, %s146
      %s161 = sphi 0, %s147
      %s165 = sphi 0, %s165
      %s167 = sphi 0, %s165
      %s168 = sphi 0, %s167
      %s182 = sphi 0, %s168
      %s186 = sphi 0, %s186
      %s188 = sphi 0, %s186
      %s189 = sphi 0, %s188
      %s203 = sphi 0, %s189
    $region4: #{tpu_custom_call.1} parent=1 // loop_header_branch
      %24 = sbr.rel (%p22) target = $region8
    $region5: #{tpu_custom_call.1} parent=1 // loop_body
      %s26 = ssub.s32 %s21, 1
      %s27 = ssub.s32 %s21, 2
      %s28 = sadd.s32 %s21, 1
      %s29 = ssub.s32 %s21, %s28
      %p30 = scmp.eq.s32.totalorder %s29, 0
      %s32 = sadd.s32 %s31, 1
      %s33 = scalar_select %p30, %s31, %s32
      %p36 = pneg %p30
      %p37 = scmp.eq.s32.totalorder %s21, 1
      %p38 = por %p36, %p37
      %p39 = scmp.ne.s32.totalorder %s31, %s34
      %p40 = scmp.eq.s32.totalorder %s21, 0
      %p41 = por %p39, %p40
      %p42 = scmp.ne.s32.totalorder %s31, %s34
      %p43 = scmp.eq.s32.totalorder %s26, 1
      %p44 = por %p42, %p43
      %p45 = scmp.ne.s32.totalorder %s34, %s35
      %p46 = scmp.eq.s32.totalorder %s26, 0
      %p47 = por %p45, %p46
      %p48 = scmp.ne.s32.totalorder %s34, %s35
      %p49 = scmp.eq.s32.totalorder %s27, 1
      %p50 = por %p48, %p49
      %p52 = scmp.ne.s32.totalorder %s35, %s51
      %p53 = scmp.eq.s32.totalorder %s27, 0
      %p54 = por %p52, %p53
      %s55 = ssub.s32 %s21, %s28
      %p56 = scmp.eq.s32.totalorder %s55, 0
      %s58 = sadd.s32 %s57, 1
      %s59 = scalar_select %p56, %s57, %s58
      %p62 = pneg %p56
      %p63 = scmp.eq.s32.totalorder %s21, 1
      %p64 = por %p62, %p63
      %p65 = scmp.ne.s32.totalorder %s57, %s60
      %p66 = scmp.eq.s32.totalorder %s21, 0
      %p67 = por %p65, %p66
      %p68 = scmp.ne.s32.totalorder %s57, %s60
      %p69 = scmp.eq.s32.totalorder %s26, 1
      %p70 = por %p68, %p69
      %p71 = scmp.ne.s32.totalorder %s60, %s61
      %p72 = scmp.eq.s32.totalorder %s26, 0
      %p73 = por %p71, %p72
      %p74 = scmp.ne.s32.totalorder %s60, %s61
      %p75 = scmp.eq.s32.totalorder %s27, 1
      %p76 = por %p74, %p75
      %p78 = scmp.ne.s32.totalorder %s61, %s77
      %p79 = scmp.eq.s32.totalorder %s27, 0
      %p80 = por %p78, %p79
      %s82 = sadd.s32 %s81, 1
      %p85 = scmp.eq.s32.totalorder %s21, 1
      %p86 = scmp.ne.s32.totalorder %s81, %s83
      %p87 = scmp.eq.s32.totalorder %s21, 0
      %p88 = por %p86, %p87
      %p89 = scmp.ne.s32.totalorder %s81, %s83
      %p90 = scmp.eq.s32.totalorder %s26, 1
      %p91 = por %p89, %p90
      %p92 = scmp.ne.s32.totalorder %s83, %s84
      %p93 = scmp.eq.s32.totalorder %s26, 0
      %p94 = por %p92, %p93
      %p95 = scmp.ne.s32.totalorder %s83, %s84
      %p96 = scmp.eq.s32.totalorder %s27, 1
      %p97 = por %p95, %p96
      %p99 = scmp.ne.s32.totalorder %s84, %s98
      %p100 = scmp.eq.s32.totalorder %s27, 0
      %p101 = por %p99, %p100
      %s103 = sadd.s32 %s102, 1
      %p106 = scmp.eq.s32.totalorder %s21, 1
      %p107 = scmp.ne.s32.totalorder %s102, %s104
      %p108 = scmp.eq.s32.totalorder %s21, 0
      %p109 = por %p107, %p108
      %p110 = scmp.ne.s32.totalorder %s102, %s104
      %p111 = scmp.eq.s32.totalorder %s26, 1
      %p112 = por %p110, %p111
      %p113 = scmp.ne.s32.totalorder %s104, %s105
      %p114 = scmp.eq.s32.totalorder %s26, 0
      %p115 = por %p113, %p114
      %p116 = scmp.ne.s32.totalorder %s104, %s105
      %p117 = scmp.eq.s32.totalorder %s27, 1
      %p118 = por %p116, %p117
      %p120 = scmp.ne.s32.totalorder %s105, %s119
      %p121 = scmp.eq.s32.totalorder %s27, 0
      %p122 = por %p120, %p121
      %s124 = sadd.s32 %s123, 1
      %p127 = scmp.eq.s32.totalorder %s21, 1
      %p128 = scmp.ne.s32.totalorder %s123, %s125
      %p129 = scmp.eq.s32.totalorder %s21, 0
      %p130 = por %p128, %p129
      %p131 = scmp.ne.s32.totalorder %s123, %s125
      %p132 = scmp.eq.s32.totalorder %s26, 1
      %p133 = por %p131, %p132
      %p134 = scmp.ne.s32.totalorder %s125, %s126
      %p135 = scmp.eq.s32.totalorder %s26, 0
      %p136 = por %p134, %p135
      %p137 = scmp.ne.s32.totalorder %s125, %s126
      %p138 = scmp.eq.s32.totalorder %s27, 1
      %p139 = por %p137, %p138
      %p141 = scmp.ne.s32.totalorder %s126, %s140
      %p142 = scmp.eq.s32.totalorder %s27, 0
      %p143 = por %p141, %p142
      %s145 = sadd.s32 %s144, 1
      %p148 = scmp.eq.s32.totalorder %s21, 1
      %p149 = scmp.ne.s32.totalorder %s144, %s146
      %p150 = scmp.eq.s32.totalorder %s21, 0
      %p151 = por %p149, %p150
      %p152 = scmp.ne.s32.totalorder %s144, %s146
      %p153 = scmp.eq.s32.totalorder %s26, 1
      %p154 = por %p152, %p153
      %p155 = scmp.ne.s32.totalorder %s146, %s147
      %p156 = scmp.eq.s32.totalorder %s26, 0
      %p157 = por %p155, %p156
      %p158 = scmp.ne.s32.totalorder %s146, %s147
      %p159 = scmp.eq.s32.totalorder %s27, 1
      %p160 = por %p158, %p159
      %p162 = scmp.ne.s32.totalorder %s147, %s161
      %p163 = scmp.eq.s32.totalorder %s27, 0
      %p164 = por %p162, %p163
      %s166 = sadd.s32 %s165, 1
      %p169 = scmp.eq.s32.totalorder %s21, 1
      %p170 = scmp.ne.s32.totalorder %s165, %s167
      %p171 = scmp.eq.s32.totalorder %s21, 0
      %p172 = por %p170, %p171
      %p173 = scmp.ne.s32.totalorder %s165, %s167
      %p174 = scmp.eq.s32.totalorder %s26, 1
      %p175 = por %p173, %p174
      %p176 = scmp.ne.s32.totalorder %s167, %s168
      %p177 = scmp.eq.s32.totalorder %s26, 0
      %p178 = por %p176, %p177
      %p179 = scmp.ne.s32.totalorder %s167, %s168
      %p180 = scmp.eq.s32.totalorder %s27, 1
      %p181 = por %p179, %p180
      %p183 = scmp.ne.s32.totalorder %s168, %s182
      %p184 = scmp.eq.s32.totalorder %s27, 0
      %p185 = por %p183, %p184
      %s187 = sadd.s32 %s186, 1
      %p190 = scmp.eq.s32.totalorder %s21, 1
      %p191 = scmp.ne.s32.totalorder %s186, %s188
      %p192 = scmp.eq.s32.totalorder %s21, 0
      %p193 = por %p191, %p192
      %p194 = scmp.ne.s32.totalorder %s186, %s188
      %p195 = scmp.eq.s32.totalorder %s26, 1
      %p196 = por %p194, %p195
      %p197 = scmp.ne.s32.totalorder %s188, %s189
      %p198 = scmp.eq.s32.totalorder %s26, 0
      %p199 = por %p197, %p198
      %p200 = scmp.ne.s32.totalorder %s188, %s189
      %p201 = scmp.eq.s32.totalorder %s27, 1
      %p202 = por %p200, %p201
      %p204 = scmp.ne.s32.totalorder %s189, %s203
      %p205 = scmp.eq.s32.totalorder %s27, 0
      %p206 = por %p204, %p205
      %p207 = scmp.le.s32.totalorder 1, %s21
      %p208 = scmp.lt.s32.totalorder %s21, 3
      %p209 = pnand %p207, %p208
      %p210 = pneg %p209
      // Predicated region
      $region9: #{tpu_custom_call.1} parent=5 // pred_check
        _
      $region10: #{tpu_custom_call.1} parent=5 // pred_check_branch
        %212 = sbr.rel (%p209) target = $region12
      $region11: #{tpu_custom_call.1} parent=5 // pred_region
        %s213 = ssub.s32 %s21, 1
        // Predicated region
        $region13: #{tpu_custom_call.1} parent=11 // pred_check
          %p214 = pneg %p94
        $region14: #{tpu_custom_call.1} parent=11 // pred_check_branch
          %216 = sbr.rel (%p214) target = $region16
        $region15: #{tpu_custom_call.1} parent=11 // pred_region
          _
        $region16: #{tpu_custom_call.1} parent=11 // pred_fallthru
          _
        // Predicated region
        $region17: #{tpu_custom_call.1} parent=11 // pred_check
          %p217 = pneg %p115
        $region18: #{tpu_custom_call.1} parent=11 // pred_check_branch
          %219 = sbr.rel (%p217) target = $region20
        $region19: #{tpu_custom_call.1} parent=11 // pred_region
          _
        $region20: #{tpu_custom_call.1} parent=11 // pred_fallthru
          _
        // Predicated region
        $region21: #{tpu_custom_call.1} parent=11 // pred_check
          %p220 = pneg %p136
        $region22: #{tpu_custom_call.1} parent=11 // pred_check_branch
          %222 = sbr.rel (%p220) target = $region24
        $region23: #{tpu_custom_call.1} parent=11 // pred_region
          %s224 = ssub.s32 1024, 1024
          %225 = vsyncadd [#allocation8], %s224
          %s226 = sshll.u32 [#allocation9], 4
          %s227 = int_to_ptr.vmem [resolvable:$true] %s226
          %232 = dma.hbm_to_vmem [thread:$0]  %s4, 1024, %s227, [#allocation8], 64, 64, 4
        $region24: #{tpu_custom_call.1} parent=11 // pred_fallthru
          _
        // Predicated region
        $region25: #{tpu_custom_call.1} parent=11 // pred_check
          %p233 = pneg %p157
        $region26: #{tpu_custom_call.1} parent=11 // pred_check_branch
          %235 = sbr.rel (%p233) target = $region28
        $region27: #{tpu_custom_call.1} parent=11 // pred_region
          %s237 = ssub.s32 4096, 4096
          %238 = vsyncadd [#allocation11], %s237
          %s239 = sshll.u32 [#allocation10], 4
          %s240 = int_to_ptr.vmem [resolvable:$true] %s239
          %245 = dma.hbm_to_vmem [thread:$0]  %s5, 4096, %s240, [#allocation11], 256, 256, 16
        $region28: #{tpu_custom_call.1} parent=11 // pred_fallthru
          _
        // Predicated region
        $region29: #{tpu_custom_call.1} parent=11 // pred_check
          %p246 = pneg %p178
        $region30: #{tpu_custom_call.1} parent=11 // pred_check_branch
          %248 = sbr.rel (%p246) target = $region32
        $region31: #{tpu_custom_call.1} parent=11 // pred_region
          _
        $region32: #{tpu_custom_call.1} parent=11 // pred_fallthru
          _
      $region12: #{tpu_custom_call.1} parent=5 // pred_fallthru
        _
      %p249 = scmp.lt.s32.totalorder %s21, 2
      // Predicated region
      $region33: #{tpu_custom_call.1} parent=5 // pred_check
        %p250 = pneg %p249
      $region34: #{tpu_custom_call.1} parent=5 // pred_check_branch
        %252 = sbr.rel (%p250) target = $region36
      $region35: #{tpu_custom_call.1} parent=5 // pred_region
        // Predicated region
        $region37: #{tpu_custom_call.1} parent=35 // pred_check
          %p253 = pneg %p41
        $region38: #{tpu_custom_call.1} parent=35 // pred_check_branch
          %255 = sbr.rel (%p253) target = $region40
        $region39: #{tpu_custom_call.1} parent=35 // pred_region
          %s256 = sand.u32 %s31, 1
          %s257 = scalar_lea.sflag [#allocation5], %s256
          %s258 = sand.u32 %s31, 1
          %s259 = smul.addr %s258, 8
          %s260 = scalar_lea.vmem [#allocation4], %s259
          %s262 = ssub.s32 128, 128
          %263 = vsyncadd %s257, %s262
          %s264 = smul.addr %s21, 64
          %s265 = scalar_lea.hbm %s0, %s264
          %s266 = sshll.u32 %s260, 4
          %s267 = int_to_ptr.vmem [resolvable:$true] %s266
          %272 = dma.hbm_to_vmem [thread:$0]  %s265, 128, %s267, %s257, 128, 64, 4
        $region40: #{tpu_custom_call.1} parent=35 // pred_fallthru
          _
        // Predicated region
        $region41: #{tpu_custom_call.1} parent=35 // pred_check
          %p273 = pneg %p67
        $region42: #{tpu_custom_call.1} parent=35 // pred_check_branch
          %275 = sbr.rel (%p273) target = $region44
        $region43: #{tpu_custom_call.1} parent=35 // pred_region
          %s276 = sand.u32 %s21, 1
          %s277 = scalar_lea.sflag [#allocation8], %s276
          %s278 = sand.u32 %s57, 1
          %s279 = smul.addr %s278, 64
          %s280 = scalar_lea.vmem [#allocation7], %s279
          %s281 = smul.u32 16, %s21
          %s283 = ssub.s32 1024, 1024
          %284 = vsyncadd %s277, %s283
          %s285 = smul.addr %s281, 64
          %s286 = scalar_lea.hbm %s1, %s285
          %s287 = sshll.u32 %s280, 4
          %s288 = int_to_ptr.vmem [resolvable:$true] %s287
          %293 = dma.hbm_to_vmem [thread:$0]  %s286, 1024, %s288, %s277, 64, 64, 4
        $region44: #{tpu_custom_call.1} parent=35 // pred_fallthru
          _
      $region36: #{tpu_custom_call.1} parent=5 // pred_fallthru
        _
      %p294 = scmp.le.s32.totalorder 1, %s21
      %p295 = scmp.lt.s32.totalorder %s21, 3
      %p296 = pnand %p294, %p295
      %p297 = pneg %p296
      // Predicated region
      $region45: #{tpu_custom_call.1} parent=5 // pred_check
        _
      $region46: #{tpu_custom_call.1} parent=5 // pred_check_branch
        %299 = sbr.rel (%p296) target = $region48
      $region47: #{tpu_custom_call.1} parent=5 // pred_region
        %s300 = ssub.s32 %s21, 1
        %s301 = sand.u32 %s34, 1
        %s302 = scalar_lea.sflag [#allocation5], %s301
        %s303 = sand.u32 %s34, 1
        %s304 = smul.addr %s303, 8
        %s305 = scalar_lea.vmem [#allocation4], %s304
        // Predicated region
        $region49: #{tpu_custom_call.1} parent=47 // pred_check
          %p306 = pneg %p47
        $region50: #{tpu_custom_call.1} parent=47 // pred_check_branch
          %308 = sbr.rel (%p306) target = $region52
        $region51: #{tpu_custom_call.1} parent=47 // pred_region
          %309 = dma.done %s302, 128
        $region52: #{tpu_custom_call.1} parent=47 // pred_fallthru
          _
        %s310 = sand.u32 %s26, 1
        %s311 = scalar_lea.sflag [#allocation8], %s310
        %s312 = sand.u32 %s60, 1
        %s313 = smul.addr %s312, 64
        %s314 = scalar_lea.vmem [#allocation7], %s313
        // Predicated region
        $region53: #{tpu_custom_call.1} parent=47 // pred_check
          %p315 = pneg %p73
        $region54: #{tpu_custom_call.1} parent=47 // pred_check_branch
          %317 = sbr.rel (%p315) target = $region56
        $region55: #{tpu_custom_call.1} parent=47 // pred_region
          %318 = dma.done %s311, 1024
        $region56: #{tpu_custom_call.1} parent=47 // pred_fallthru
          _
        // Predicated region
        $region57: #{tpu_custom_call.1} parent=47 // pred_check
          %p319 = pneg %p136
        $region58: #{tpu_custom_call.1} parent=47 // pred_check_branch
          %321 = sbr.rel (%p319) target = $region60
        $region59: #{tpu_custom_call.1} parent=47 // pred_region
          %322 = dma.done [#allocation8], 1024
        $region60: #{tpu_custom_call.1} parent=47 // pred_fallthru
          _
        // Predicated region
        $region61: #{tpu_custom_call.1} parent=47 // pred_check
          %p323 = pneg %p157
        $region62: #{tpu_custom_call.1} parent=47 // pred_check_branch
          %325 = sbr.rel (%p323) target = $region64
        $region63: #{tpu_custom_call.1} parent=47 // pred_region
          %326 = dma.done [#allocation11], 4096
        $region64: #{tpu_custom_call.1} parent=47 // pred_fallthru
          _
        %s327 = sand.u32 %s34, 1
        %s328 = scalar_lea.sflag [#allocation5], %s327
        %s329 = sand.u32 %s34, 1
        %s330 = smul.addr %s329, 8
        %s331 = scalar_lea.vmem [#allocation4], %s330
        %p332 = pneg %p47
        %p333 = pneg %p44
        %s334 = sand.u32 %s26, 1
        %s335 = scalar_lea.sflag [#allocation8], %s334
        %s336 = sand.u32 %s60, 1
        %s337 = smul.addr %s336, 64
        %s338 = scalar_lea.vmem [#allocation7], %s337
        %p339 = pneg %p73
        %p340 = pneg %p70
        %p341 = pneg %p94
        %p342 = pneg %p91
        %p343 = pneg %p115
        %p344 = pneg %p112
        %p345 = pneg %p136
        %p346 = pneg %p133
        %p347 = pneg %p157
        %p348 = pneg %p154
        %p349 = pneg %p178
        %p350 = pneg %p175
        %p351 = pneg %p199
        %p352 = pneg %p196
        %s353 = smul.u32 16, %s26
        %p355 = scmp.eq.s32.totalorder %s26, 0
        // Predicated region
        $region65: #{tpu_custom_call.1} parent=47 // pred_check
          %p356 = pneg %p355
        $region66: #{tpu_custom_call.1} parent=47 // pred_check_branch
          %358 = sbr.rel (%p356) target = $region68
        $region67: #{tpu_custom_call.1} parent=47 // pred_region
          %359 = vst [vmem:[#allocation2] sm:$0xff] 0.0
          %360 = vst [vmem:[#allocation2 + $0x8] sm:$0xff] 0.0
        $region68: #{tpu_custom_call.1} parent=47 // pred_fallthru
          _
        %v361 = vld [vmem:[#allocation2] sm:$0xff]
        %v362 = vld [vmem:[#allocation2 + $0x8] sm:$0xff]
        %v363 = vld [vmem:[%s305] sm:$0xf]
        %v364 = vld [vmem:[%s305 + $0x4] sm:$0xf]
        %v365 = vld [vmem:[%s314] sm:$0xf]
        %v366 = vld [vmem:[%s314 + $0x4] sm:$0xf]
        %v367 = vld [vmem:[%s314 + $0x8] sm:$0xf]
        %v368 = vld [vmem:[%s314 + $0xc] sm:$0xf]
        %v369 = vld [vmem:[%s314 + $0x10] sm:$0xf]
        %v370 = vld [vmem:[%s314 + $0x14] sm:$0xf]
        %v371 = vld [vmem:[%s314 + $0x18] sm:$0xf]
        %v372 = vld [vmem:[%s314 + $0x1c] sm:$0xf]
        %v373 = vld [vmem:[%s314 + $0x20] sm:$0xf]
        %v374 = vld [vmem:[%s314 + $0x24] sm:$0xf]
        %v375 = vld [vmem:[%s314 + $0x28] sm:$0xf]
        %v376 = vld [vmem:[%s314 + $0x2c] sm:$0xf]
        %v377 = vld [vmem:[%s314 + $0x30] sm:$0xf]
        %v378 = vld [vmem:[%s314 + $0x34] sm:$0xf]
        %v379 = vld [vmem:[%s314 + $0x38] sm:$0xf]
        %v380 = vld [vmem:[%s314 + $0x3c] sm:$0xf]
        %v383 = vunpack.c.l.b16 %v363
        %v384 = vunpack.c.l.b16 %v364
        %v385 = vpack.c.b16 %v384, %v383
        %v403 = vunpack.c.l.b16 %v365
        %v404 = vunpack.c.l.b16 %v366
        %v405 = vunpack.c.l.b16 %v367
        %v406 = vunpack.c.l.b16 %v368
        %v407 = vunpack.c.l.b16 %v369
        %v408 = vunpack.c.l.b16 %v370
        %v409 = vunpack.c.l.b16 %v371
        %v410 = vunpack.c.l.b16 %v372
        %v411 = vunpack.c.l.b16 %v373
        %v412 = vunpack.c.l.b16 %v374
        %v413 = vunpack.c.l.b16 %v375
        %v414 = vunpack.c.l.b16 %v376
        %v415 = vunpack.c.l.b16 %v377
        %v416 = vunpack.c.l.b16 %v378
        %v417 = vunpack.c.l.b16 %v379
        %v418 = vunpack.c.l.b16 %v380
        %v419 = vpack.c.b16 %v404, %v403
        %v420 = vpack.c.b16 %v406, %v405
        %v421 = vpack.c.b16 %v408, %v407
        %v422 = vpack.c.b16 %v410, %v409
        %v423 = vpack.c.b16 %v412, %v411
        %v424 = vpack.c.b16 %v414, %v413
        %v425 = vpack.c.b16 %v416, %v415
        %v426 = vpack.c.b16 %v418, %v417
        %435 = vmatprep.subr.bf16.mxu0 0
        %436 = vmatpush1.bf16.msra.mxu0 %v426
        %437 = vmatprep.subr.bf16.mxu0 0
        %438 = vmatpush1.bf16.msra.mxu0 %v425
        %439 = vmatprep.subr.bf16.mxu0 0
        %440 = vmatpush1.bf16.msra.mxu0 %v424
        %441 = vmatprep.subr.bf16.mxu0 0
        %442 = vmatpush1.bf16.msra.mxu0 %v423
        %443 = vmatprep.subr.bf16.mxu0 0
        %444 = vmatpush1.bf16.msra.mxu0 %v422
        %445 = vmatprep.subr.bf16.mxu0 0
        %446 = vmatpush1.bf16.msra.mxu0 %v421
        %447 = vmatprep.subr.bf16.mxu0 0
        %448 = vmatpush1.bf16.msra.mxu0 %v420
        %449 = vmatprep.subr.bf16.mxu0 0
        %450 = vmatpush1.bf16.msra.mxu0 %v419
        %451 = vmatprep.subr.bf16.mxu0 0
        %452 = vmatpush2.bf16.msra.mxu0 0
        %453 = vmatprep.subr.bf16.mxu0 0
        %454 = vmatpush2.bf16.msra.mxu0 0
        %455 = vmatprep.subr.bf16.mxu0 0
        %456 = vmatpush2.bf16.msra.mxu0 0
        %457 = vmatprep.subr.bf16.mxu0 0
        %458 = vmatpush2.bf16.msra.mxu0 0
        %459 = vmatprep.subr.bf16.mxu0 0
        %460 = vmatpush2.bf16.msra.mxu0 0
        %461 = vmatprep.subr.bf16.mxu0 0
        %462 = vmatpush2.bf16.msra.mxu0 0
        %463 = vmatprep.subr.bf16.mxu0 0
        %464 = vmatpush2.bf16.msra.mxu0 0
        %465 = vmatprep.subr.bf16.mxu0 0
        %466 = vmatpush2.bf16.msra.mxu0 0
        %467 = vmatprep.mubr.bf16.mxu0 0
        %468 = vmatmul.mubr.bf16.gmra.mxu0 %v385
        %v469 = vpop.f32.mrf.mxu0
        %v470 = vadd.f32 0.0, %v469
        %v471 = vpop.f32.mrf.mxu0
        %v472 = vpop.f32.mrf.mxu0
        %v473 = vadd.f32 0.0, %v472
        %v474 = vpop.f32.mrf.mxu0
        %475 = vdwg.mxu0
        %v476 = vadd.f32 %v361, %v470
        %v477 = vadd.f32 %v362, %v473
        %478 = vst [vmem:[#allocation2] sm:$0xff] %v476
        %479 = vst [vmem:[#allocation2 + $0x8] sm:$0xff] %v477
        %p480 = scmp.eq.s32.totalorder %s26, 1
        // Predicated region
        $region69: #{tpu_custom_call.1} parent=47 // pred_check
          %p481 = pneg %p480
        $region70: #{tpu_custom_call.1} parent=47 // pred_check_branch
          %483 = sbr.rel (%p481) target = $region72
        $region71: #{tpu_custom_call.1} parent=47 // pred_region
          %v484 = vlaneseq
          %v485 = vshrl.u32 %v484, 7
          %v486 = vadd.s32 %v485, 8
          %vm487 = vcmp.lt.s32.totalorder %v485, 6
          %vm488 = vcmp.lt.s32.totalorder %v486, 6
          %v489 = vsel %vm487, 1, 0
          %v490 = vsel %vm488, 1, 0
          %v491 = vcvt.s32.f32 %v489
          %v492 = vcvt.s32.f32 %v490
          %v493 = vld [vmem:[#allocation2] sm:$0xff]
          %v494 = vld [vmem:[#allocation2 + $0x8] sm:$0xff]
          %v495 = vld [vmem:[%s2] sm:$0x1]
          %v496 = vld [vmem:[%s3] sm:$0x1]
          %v497 = vadd.f32 %v493, %v494
          %v498 = vrot.slane %v497, 4
          %v499 = vadd.f32 %v497, %v498
          %v500 = vrot.slane %v499, 2
          %v501 = vadd.f32 %v499, %v500
          %v502 = vrot.slane %v501, 1
          %v503 = vadd.f32 %v501, %v502
          %v504 = vmul.f32 %v493, %v493
          %v505 = vmul.f32 %v494, %v494
          %v506 = vadd.f32 %v504, %v505
          %v507 = vrot.slane %v506, 4
          %v508 = vadd.f32 %v506, %v507
          %v509 = vrot.slane %v508, 2
          %v510 = vadd.f32 %v508, %v509
          %v511 = vrot.slane %v510, 1
          %v512 = vadd.f32 %v510, %v511
          %v513 = vmul.f32 %v503, 0.16666667
          %v514 = vmul.f32 %v512, 0.16666667
          %v515 = vmul.f32 %v513, %v513
          %v516 = vsub.f32 %v514, %v515
          %v517 = vmax.f32 %v516, 0.0
          %v518 = vadd.f32 %v517, 1e-05
          %v519 = vrsqrt.pop %v518
          %v520 = vmul.f32 %v495, %v519
          %v521 = vmul.f32 %v513, %v520
          %v522 = vsub.f32 %v496, %v521
          %v524 = vlaneseq
          %v525 = vshrl.u32 %v524, 7
          %v526 = vsub.s32 0, %v525
          %v527 = vrot.slane %v520, %v526
          %v529 = vmul.f32 %v493, %v527
          %v530 = vmul.f32 %v494, %v527
          %v532 = vlaneseq
          %v533 = vshrl.u32 %v532, 7
          %v534 = vsub.s32 0, %v533
          %v535 = vrot.slane %v522, %v534
          %v537 = vadd.f32 %v529, %v535
          %v538 = vadd.f32 %v530, %v535
          %v539 = vmul.f32 %v537, %v491
          %v540 = vmul.f32 %v538, %v492
          %v541 = vmax.f32 %v539, 0.0
          %v542 = vmax.f32 %v540, 0.0
          %v543 = vpack.c.bf16 %v542, %v541
          %v545 = vunpack.c.l.b16 %v543
          %v546 = vunpack.c.h.b16 %v543
          %v547 = vpack.c.b16 %v545, %v545
          %v548 = vpack.c.b16 %v546, %v546
          %551 = vst [vmem:[#allocation3] sm:$0xf] %v547
          %552 = vst [vmem:[#allocation3 + $0x4] sm:$0xf] %v548
          %v553 = vld [vmem:[#allocation3] sm:$0xf]
          %v554 = vld [vmem:[#allocation3 + $0x4] sm:$0xf]
          %v555 = vld [vmem:[#allocation9] sm:$0xf]
          %v556 = vld [vmem:[#allocation9 + $0x4] sm:$0xf]
          %v557 = vld [vmem:[#allocation9 + $0x8] sm:$0xf]
          %v558 = vld [vmem:[#allocation9 + $0xc] sm:$0xf]
          %v559 = vld [vmem:[#allocation9 + $0x10] sm:$0xf]
          %v560 = vld [vmem:[#allocation9 + $0x14] sm:$0xf]
          %v561 = vld [vmem:[#allocation9 + $0x18] sm:$0xf]
          %v562 = vld [vmem:[#allocation9 + $0x1c] sm:$0xf]
          %v563 = vld [vmem:[#allocation9 + $0x20] sm:$0xf]
          %v564 = vld [vmem:[#allocation9 + $0x24] sm:$0xf]
          %v565 = vld [vmem:[#allocation9 + $0x28] sm:$0xf]
          %v566 = vld [vmem:[#allocation9 + $0x2c] sm:$0xf]
          %v567 = vld [vmem:[#allocation9 + $0x30] sm:$0xf]
          %v568 = vld [vmem:[#allocation9 + $0x34] sm:$0xf]
          %v569 = vld [vmem:[#allocation9 + $0x38] sm:$0xf]
          %v570 = vld [vmem:[#allocation9 + $0x3c] sm:$0xf]
          %v573 = vunpack.c.l.b16 %v553
          %v574 = vunpack.c.l.b16 %v554
          %v575 = vpack.c.b16 %v574, %v573
          %v593 = vunpack.c.l.b16 %v555
          %v594 = vunpack.c.l.b16 %v556
          %v595 = vunpack.c.l.b16 %v557
          %v596 = vunpack.c.l.b16 %v558
          %v597 = vunpack.c.l.b16 %v559
          %v598 = vunpack.c.l.b16 %v560
          %v599 = vunpack.c.l.b16 %v561
          %v600 = vunpack.c.l.b16 %v562
          %v601 = vunpack.c.l.b16 %v563
          %v602 = vunpack.c.l.b16 %v564
          %v603 = vunpack.c.l.b16 %v565
          %v604 = vunpack.c.l.b16 %v566
          %v605 = vunpack.c.l.b16 %v567
          %v606 = vunpack.c.l.b16 %v568
          %v607 = vunpack.c.l.b16 %v569
          %v608 = vunpack.c.l.b16 %v570
          %v609 = vpack.c.b16 %v594, %v593
          %v610 = vpack.c.b16 %v596, %v595
          %v611 = vpack.c.b16 %v598, %v597
          %v612 = vpack.c.b16 %v600, %v599
          %v613 = vpack.c.b16 %v602, %v601
          %v614 = vpack.c.b16 %v604, %v603
          %v615 = vpack.c.b16 %v606, %v605
          %v616 = vpack.c.b16 %v608, %v607
          %625 = vmatprep.subr.bf16.mxu0 0
          %626 = vmatpush1.bf16.msra.mxu0 %v616
          %627 = vmatprep.subr.bf16.mxu0 0
          %628 = vmatpush1.bf16.msra.mxu0 %v615
          %629 = vmatprep.subr.bf16.mxu0 0
          %630 = vmatpush1.bf16.msra.mxu0 %v614
          %631 = vmatprep.subr.bf16.mxu0 0
          %632 = vmatpush1.bf16.msra.mxu0 %v613
          %633 = vmatprep.subr.bf16.mxu0 0
          %634 = vmatpush1.bf16.msra.mxu0 %v612
          %635 = vmatprep.subr.bf16.mxu0 0
          %636 = vmatpush1.bf16.msra.mxu0 %v611
          %637 = vmatprep.subr.bf16.mxu0 0
          %638 = vmatpush1.bf16.msra.mxu0 %v610
          %639 = vmatprep.subr.bf16.mxu0 0
          %640 = vmatpush1.bf16.msra.mxu0 %v609
          %641 = vmatprep.subr.bf16.mxu0 0
          %642 = vmatpush2.bf16.msra.mxu0 0
          %643 = vmatprep.subr.bf16.mxu0 0
          %644 = vmatpush2.bf16.msra.mxu0 0
          %645 = vmatprep.subr.bf16.mxu0 0
          %646 = vmatpush2.bf16.msra.mxu0 0
          %647 = vmatprep.subr.bf16.mxu0 0
          %648 = vmatpush2.bf16.msra.mxu0 0
          %649 = vmatprep.subr.bf16.mxu0 0
          %650 = vmatpush2.bf16.msra.mxu0 0
          %651 = vmatprep.subr.bf16.mxu0 0
          %652 = vmatpush2.bf16.msra.mxu0 0
          %653 = vmatprep.subr.bf16.mxu0 0
          %654 = vmatpush2.bf16.msra.mxu0 0
          %655 = vmatprep.subr.bf16.mxu0 0
          %656 = vmatpush2.bf16.msra.mxu0 0
          %657 = vmatprep.mubr.bf16.mxu0 0
          %658 = vmatmul.mubr.bf16.gmra.mxu0 %v575
          %v659 = vpop.f32.mrf.mxu0
          %v660 = vadd.f32 0.0, %v659
          %v661 = vpop.f32.mrf.mxu0
          %v662 = vpop.f32.mrf.mxu0
          %v663 = vadd.f32 0.0, %v662
          %v664 = vpop.f32.mrf.mxu0
          %665 = vdwg.mxu0
          %v666 = vadd.f32 %v660, %v663
          %v667 = vrot.slane %v666, 4
          %v668 = vadd.f32 %v666, %v667
          %v669 = vrot.slane %v668, 2
          %v670 = vadd.f32 %v668, %v669
          %v671 = vrot.slane %v670, 1
          %v672 = vadd.f32 %v670, %v671
          %v673 = vmul.f32 %v660, %v660
          %v674 = vmul.f32 %v663, %v663
          %v675 = vadd.f32 %v673, %v674
          %v676 = vrot.slane %v675, 4
          %v677 = vadd.f32 %v675, %v676
          %v678 = vrot.slane %v677, 2
          %v679 = vadd.f32 %v677, %v678
          %v680 = vrot.slane %v679, 1
          %v681 = vadd.f32 %v679, %v680
          %v682 = vmul.f32 %v672, 0.16666667
          %v683 = vmul.f32 %v681, 0.16666667
          %v684 = vmul.f32 %v682, %v682
          %v685 = vsub.f32 %v683, %v684
          %v686 = vmax.f32 %v685, 0.0
          %v687 = vadd.f32 %v686, 1e-05
          %v688 = vrsqrt.pop %v687
          %v689 = vmul.f32 %v682, %v688
          %v690 = vsub.f32 0.0, %v689
          %v691 = vmul.f32 %v660, %v688
          %v692 = vmul.f32 %v663, %v688
          %v693 = vadd.f32 %v691, %v690
          %v694 = vadd.f32 %v692, %v690
          %v695 = vmul.f32 %v693, %v491
          %v696 = vmul.f32 %v694, %v492
          %v697 = vmax.f32 %v695, 0.0
          %v698 = vmax.f32 %v696, 0.0
          %v699 = vpack.c.bf16 %v698, %v697
          %v701 = vunpack.c.l.b16 %v699
          %v702 = vunpack.c.h.b16 %v699
          %v703 = vpack.c.b16 %v701, %v701
          %v704 = vpack.c.b16 %v702, %v702
          %707 = vst [vmem:[#allocation3] sm:$0xf] %v703
          %708 = vst [vmem:[#allocation3 + $0x4] sm:$0xf] %v704
          %v709 = vld [vmem:[#allocation3] sm:$0xf]
          %v710 = vld [vmem:[#allocation3 + $0x4] sm:$0xf]
          %v711 = vld [vmem:[#allocation10] sm:$0xff]
          %v712 = vld [vmem:[#allocation10 + $0x8] sm:$0xff]
          %v713 = vld [vmem:[#allocation10 + $0x10] sm:$0xff]
          %v714 = vld [vmem:[#allocation10 + $0x18] sm:$0xff]
          %v715 = vld [vmem:[#allocation10 + $0x20] sm:$0xff]
          %v716 = vld [vmem:[#allocation10 + $0x28] sm:$0xff]
          %v717 = vld [vmem:[#allocation10 + $0x30] sm:$0xff]
          %v718 = vld [vmem:[#allocation10 + $0x38] sm:$0xff]
          %v719 = vld [vmem:[#allocation10 + $0x40] sm:$0xff]
          %v720 = vld [vmem:[#allocation10 + $0x48] sm:$0xff]
          %v721 = vld [vmem:[#allocation10 + $0x50] sm:$0xff]
          %v722 = vld [vmem:[#allocation10 + $0x58] sm:$0xff]
          %v723 = vld [vmem:[#allocation10 + $0x60] sm:$0xff]
          %v724 = vld [vmem:[#allocation10 + $0x68] sm:$0xff]
          %v725 = vld [vmem:[#allocation10 + $0x70] sm:$0xff]
          %v726 = vld [vmem:[#allocation10 + $0x78] sm:$0xff]
          %v727 = vld [vmem:[#allocation10 + $0x80] sm:$0xff]
          %v728 = vld [vmem:[#allocation10 + $0x88] sm:$0xff]
          %v729 = vld [vmem:[#allocation10 + $0x90] sm:$0xff]
          %v730 = vld [vmem:[#allocation10 + $0x98] sm:$0xff]
          %v731 = vld [vmem:[#allocation10 + $0xa0] sm:$0xff]
          %v732 = vld [vmem:[#allocation10 + $0xa8] sm:$0xff]
          %v733 = vld [vmem:[#allocation10 + $0xb0] sm:$0xff]
          %v734 = vld [vmem:[#allocation10 + $0xb8] sm:$0xff]
          %v735 = vld [vmem:[#allocation10 + $0xc0] sm:$0xff]
          %v736 = vld [vmem:[#allocation10 + $0xc8] sm:$0xff]
          %v737 = vld [vmem:[#allocation10 + $0xd0] sm:$0xff]
          %v738 = vld [vmem:[#allocation10 + $0xd8] sm:$0xff]
          %v739 = vld [vmem:[#allocation10 + $0xe0] sm:$0xff]
          %v740 = vld [vmem:[#allocation10 + $0xe8] sm:$0xff]
          %v741 = vld [vmem:[#allocation10 + $0xf0] sm:$0xff]
          %v742 = vld [vmem:[#allocation10 + $0xf8] sm:$0xff]
          %v745 = vunpack.c.l.b16 %v709
          %v746 = vunpack.c.l.b16 %v710
          %v747 = vpack.c.b16 %v746, %v745
          %v781 = vunpack.c.l.b16 %v711
          %v782 = vunpack.c.h.b16 %v711
          %v783 = vunpack.c.l.b16 %v712
          %v784 = vunpack.c.h.b16 %v712
          %v785 = vunpack.c.l.b16 %v713
          %v786 = vunpack.c.h.b16 %v713
          %v787 = vunpack.c.l.b16 %v714
          %v788 = vunpack.c.h.b16 %v714
          %v789 = vunpack.c.l.b16 %v715
          %v790 = vunpack.c.h.b16 %v715
          %v791 = vunpack.c.l.b16 %v716
          %v792 = vunpack.c.h.b16 %v716
          %v793 = vunpack.c.l.b16 %v717
          %v794 = vunpack.c.h.b16 %v717
          %v795 = vunpack.c.l.b16 %v718
          %v796 = vunpack.c.h.b16 %v718
          %v797 = vunpack.c.l.b16 %v719
          %v798 = vunpack.c.h.b16 %v719
          %v799 = vunpack.c.l.b16 %v720
          %v800 = vunpack.c.h.b16 %v720
          %v801 = vunpack.c.l.b16 %v721
          %v802 = vunpack.c.h.b16 %v721
          %v803 = vunpack.c.l.b16 %v722
          %v804 = vunpack.c.h.b16 %v722
          %v805 = vunpack.c.l.b16 %v723
          %v806 = vunpack.c.h.b16 %v723
          %v807 = vunpack.c.l.b16 %v724
          %v808 = vunpack.c.h.b16 %v724
          %v809 = vunpack.c.l.b16 %v725
          %v810 = vunpack.c.h.b16 %v725
          %v811 = vunpack.c.l.b16 %v726
          %v812 = vunpack.c.h.b16 %v726
          %v813 = vunpack.c.l.b16 %v727
          %v814 = vunpack.c.h.b16 %v727
          %v815 = vunpack.c.l.b16 %v728
          %v816 = vunpack.c.h.b16 %v728
          %v817 = vunpack.c.l.b16 %v729
          %v818 = vunpack.c.h.b16 %v729
          %v819 = vunpack.c.l.b16 %v730
          %v820 = vunpack.c.h.b16 %v730
          %v821 = vunpack.c.l.b16 %v731
          %v822 = vunpack.c.h.b16 %v731
          %v823 = vunpack.c.l.b16 %v732
          %v824 = vunpack.c.h.b16 %v732
          %v825 = vunpack.c.l.b16 %v733
          %v826 = vunpack.c.h.b16 %v733
          %v827 = vunpack.c.l.b16 %v734
          %v828 = vunpack.c.h.b16 %v734
          %v829 = vunpack.c.l.b16 %v735
          %v830 = vunpack.c.h.b16 %v735
          %v831 = vunpack.c.l.b16 %v736
          %v832 = vunpack.c.h.b16 %v736
          %v833 = vunpack.c.l.b16 %v737
          %v834 = vunpack.c.h.b16 %v737
          %v835 = vunpack.c.l.b16 %v738
          %v836 = vunpack.c.h.b16 %v738
          %v837 = vunpack.c.l.b16 %v739
          %v838 = vunpack.c.h.b16 %v739
          %v839 = vunpack.c.l.b16 %v740
          %v840 = vunpack.c.h.b16 %v740
          %v841 = vunpack.c.l.b16 %v741
          %v842 = vunpack.c.h.b16 %v741
          %v843 = vunpack.c.l.b16 %v742
          %v844 = vunpack.c.h.b16 %v742
          %v845 = vpack.c.b16 %v785, %v781
          %v846 = vpack.c.b16 %v786, %v782
          %v847 = vpack.c.b16 %v787, %v783
          %v848 = vpack.c.b16 %v788, %v784
          %v849 = vpack.c.b16 %v793, %v789
          %v850 = vpack.c.b16 %v794, %v790
          %v851 = vpack.c.b16 %v795, %v791
          %v852 = vpack.c.b16 %v796, %v792
          %v853 = vpack.c.b16 %v801, %v797
          %v854 = vpack.c.b16 %v802, %v798
          %v855 = vpack.c.b16 %v803, %v799
          %v856 = vpack.c.b16 %v804, %v800
          %v857 = vpack.c.b16 %v809, %v805
          %v858 = vpack.c.b16 %v810, %v806
          %v859 = vpack.c.b16 %v811, %v807
          %v860 = vpack.c.b16 %v812, %v808
          %v861 = vpack.c.b16 %v817, %v813
          %v862 = vpack.c.b16 %v818, %v814
          %v863 = vpack.c.b16 %v819, %v815
          %v864 = vpack.c.b16 %v820, %v816
          %v865 = vpack.c.b16 %v825, %v821
          %v866 = vpack.c.b16 %v826, %v822
          %v867 = vpack.c.b16 %v827, %v823
          %v868 = vpack.c.b16 %v828, %v824
          %v869 = vpack.c.b16 %v833, %v829
          %v870 = vpack.c.b16 %v834, %v830
          %v871 = vpack.c.b16 %v835, %v831
          %v872 = vpack.c.b16 %v836, %v832
          %v873 = vpack.c.b16 %v841, %v837
          %v874 = vpack.c.b16 %v842, %v838
          %v875 = vpack.c.b16 %v843, %v839
          %v876 = vpack.c.b16 %v844, %v840
          %909 = vmatprep.subr.bf16.mxu0 %v874
          %910 = vmatpush1.bf16.msra.mxu0 %v873
          %911 = vmatprep.subr.bf16.mxu0 %v870
          %912 = vmatpush1.bf16.msra.mxu0 %v869
          %913 = vmatprep.subr.bf16.mxu0 %v866
          %914 = vmatpush1.bf16.msra.mxu0 %v865
          %915 = vmatprep.subr.bf16.mxu0 %v862
          %916 = vmatpush1.bf16.msra.mxu0 %v861
          %917 = vmatprep.subr.bf16.mxu0 %v858
          %918 = vmatpush1.bf16.msra.mxu0 %v857
          %919 = vmatprep.subr.bf16.mxu0 %v854
          %920 = vmatpush1.bf16.msra.mxu0 %v853
          %921 = vmatprep.subr.bf16.mxu0 %v850
          %922 = vmatpush1.bf16.msra.mxu0 %v849
          %923 = vmatprep.subr.bf16.mxu0 %v846
          %924 = vmatpush1.bf16.msra.mxu0 %v845
          %925 = vmatprep.subr.bf16.mxu0 0
          %926 = vmatpush2.bf16.msra.mxu0 0
          %927 = vmatprep.subr.bf16.mxu0 0
          %928 = vmatpush2.bf16.msra.mxu0 0
          %929 = vmatprep.subr.bf16.mxu0 0
          %930 = vmatpush2.bf16.msra.mxu0 0
          %931 = vmatprep.subr.bf16.mxu0 0
          %932 = vmatpush2.bf16.msra.mxu0 0
          %933 = vmatprep.subr.bf16.mxu0 0
          %934 = vmatpush2.bf16.msra.mxu0 0
          %935 = vmatprep.subr.bf16.mxu0 0
          %936 = vmatpush2.bf16.msra.mxu0 0
          %937 = vmatprep.subr.bf16.mxu0 0
          %938 = vmatpush2.bf16.msra.mxu0 0
          %939 = vmatprep.subr.bf16.mxu0 0
          %940 = vmatpush2.bf16.msra.mxu0 0
          %941 = vmatprep.mubr.bf16.mxu0 0
          %942 = vmatmul.mubr.bf16.gmra.mxu0 %v747
          %v943 = vpop.f32.mrf.mxu0
          %v944 = vadd.f32 0.0, %v943
          %v945 = vpop.f32.mrf.mxu0
          %v946 = vadd.f32 0.0, %v945
          %v947 = vpop.f32.mrf.mxu0
          %v948 = vadd.f32 0.0, %v947
          %v949 = vpop.f32.mrf.mxu0
          %v950 = vadd.f32 0.0, %v949
          %951 = vdwg.mxu0
          %952 = vmatprep.subr.bf16.mxu0 %v876
          %953 = vmatpush1.bf16.msra.mxu0 %v875
          %954 = vmatprep.subr.bf16.mxu0 %v872
          %955 = vmatpush1.bf16.msra.mxu0 %v871
          %956 = vmatprep.subr.bf16.mxu0 %v868
          %957 = vmatpush1.bf16.msra.mxu0 %v867
          %958 = vmatprep.subr.bf16.mxu0 %v864
          %959 = vmatpush1.bf16.msra.mxu0 %v863
          %960 = vmatprep.subr.bf16.mxu0 %v860
          %961 = vmatpush1.bf16.msra.mxu0 %v859
          %962 = vmatprep.subr.bf16.mxu0 %v856
          %963 = vmatpush1.bf16.msra.mxu0 %v855
          %964 = vmatprep.subr.bf16.mxu0 %v852
          %965 = vmatpush1.bf16.msra.mxu0 %v851
          %966 = vmatprep.subr.bf16.mxu0 %v848
          %967 = vmatpush1.bf16.msra.mxu0 %v847
          %968 = vmatprep.subr.bf16.mxu0 0
          %969 = vmatpush2.bf16.msra.mxu0 0
          %970 = vmatprep.subr.bf16.mxu0 0
          %971 = vmatpush2.bf16.msra.mxu0 0
          %972 = vmatprep.subr.bf16.mxu0 0
          %973 = vmatpush2.bf16.msra.mxu0 0
          %974 = vmatprep.subr.bf16.mxu0 0
          %975 = vmatpush2.bf16.msra.mxu0 0
          %976 = vmatprep.subr.bf16.mxu0 0
          %977 = vmatpush2.bf16.msra.mxu0 0
          %978 = vmatprep.subr.bf16.mxu0 0
          %979 = vmatpush2.bf16.msra.mxu0 0
          %980 = vmatprep.subr.bf16.mxu0 0
          %981 = vmatpush2.bf16.msra.mxu0 0
          %982 = vmatprep.subr.bf16.mxu0 0
          %983 = vmatpush2.bf16.msra.mxu0 0
          %984 = vmatprep.mubr.bf16.mxu0 0
          %985 = vmatmul.mubr.bf16.gmra.mxu0 %v747
          %v986 = vpop.f32.mrf.mxu0
          %v987 = vadd.f32 0.0, %v986
          %v988 = vpop.f32.mrf.mxu0
          %v989 = vadd.f32 0.0, %v988
          %v990 = vpop.f32.mrf.mxu0
          %v991 = vadd.f32 0.0, %v990
          %v992 = vpop.f32.mrf.mxu0
          %v993 = vadd.f32 0.0, %v992
          %994 = vdwg.mxu0
          %v995 = vld [vmem:[%s6] sm:$0xf]
          %v996 = vadd.f32 %v944, %v948
          %v997 = vrot.slane %v996, 4
          %v998 = vadd.f32 %v996, %v997
          %v999 = vrot.slane %v998, 2
          %v1000 = vadd.f32 %v998, %v999
          %v1001 = vrot.slane %v1000, 1
          %v1002 = vadd.f32 %v1000, %v1001
          %v1003 = vadd.f32 %v946, %v950
          %v1004 = vrot.slane %v1003, 4
          %v1005 = vadd.f32 %v1003, %v1004
          %v1006 = vrot.slane %v1005, 2
          %v1007 = vadd.f32 %v1005, %v1006
          %v1008 = vrot.slane %v1007, 1
          %v1009 = vadd.f32 %v1007, %v1008
          %v1010 = vadd.f32 %v987, %v991
          %v1011 = vrot.slane %v1010, 4
          %v1012 = vadd.f32 %v1010, %v1011
          %v1013 = vrot.slane %v1012, 2
          %v1014 = vadd.f32 %v1012, %v1013
          %v1015 = vrot.slane %v1014, 1
          %v1016 = vadd.f32 %v1014, %v1015
          %v1017 = vadd.f32 %v989, %v993
          %v1018 = vrot.slane %v1017, 4
          %v1019 = vadd.f32 %v1017, %v1018
          %v1020 = vrot.slane %v1019, 2
          %v1021 = vadd.f32 %v1019, %v1020
          %v1022 = vrot.slane %v1021, 1
          %v1023 = vadd.f32 %v1021, %v1022
          %v1024 = vmul.f32 %v944, %v944
          %v1025 = vmul.f32 %v946, %v946
          %v1026 = vmul.f32 %v987, %v987
          %v1027 = vmul.f32 %v989, %v989
          %v1028 = vmul.f32 %v948, %v948
          %v1029 = vmul.f32 %v950, %v950
          %v1030 = vmul.f32 %v991, %v991
          %v1031 = vmul.f32 %v993, %v993
          %v1032 = vadd.f32 %v1024, %v1028
          %v1033 = vrot.slane %v1032, 4
          %v1034 = vadd.f32 %v1032, %v1033
          %v1035 = vrot.slane %v1034, 2
          %v1036 = vadd.f32 %v1034, %v1035
          %v1037 = vrot.slane %v1036, 1
          %v1038 = vadd.f32 %v1036, %v1037
          %v1039 = vadd.f32 %v1025, %v1029
          %v1040 = vrot.slane %v1039, 4
          %v1041 = vadd.f32 %v1039, %v1040
          %v1042 = vrot.slane %v1041, 2
          %v1043 = vadd.f32 %v1041, %v1042
          %v1044 = vrot.slane %v1043, 1
          %v1045 = vadd.f32 %v1043, %v1044
          %v1046 = vadd.f32 %v1026, %v1030
          %v1047 = vrot.slane %v1046, 4
          %v1048 = vadd.f32 %v1046, %v1047
          %v1049 = vrot.slane %v1048, 2
          %v1050 = vadd.f32 %v1048, %v1049
          %v1051 = vrot.slane %v1050, 1
          %v1052 = vadd.f32 %v1050, %v1051
          %v1053 = vadd.f32 %v1027, %v1031
          %v1054 = vrot.slane %v1053, 4
          %v1055 = vadd.f32 %v1053, %v1054
          %v1056 = vrot.slane %v1055, 2
          %v1057 = vadd.f32 %v1055, %v1056
          %v1058 = vrot.slane %v1057, 1
          %v1059 = vadd.f32 %v1057, %v1058
          %v1060 = vmul.f32 %v1002, 0.16666667
          %v1061 = vmul.f32 %v1009, 0.16666667
          %v1062 = vmul.f32 %v1016, 0.16666667
          %v1063 = vmul.f32 %v1023, 0.16666667
          %v1064 = vmul.f32 %v1038, 0.16666667
          %v1065 = vmul.f32 %v1045, 0.16666667
          %v1066 = vmul.f32 %v1052, 0.16666667
          %v1067 = vmul.f32 %v1059, 0.16666667
          %v1068 = vmul.f32 %v1060, %v1060
          %v1069 = vmul.f32 %v1061, %v1061
          %v1070 = vmul.f32 %v1062, %v1062
          %v1071 = vmul.f32 %v1063, %v1063
          %v1072 = vsub.f32 %v1064, %v1068
          %v1073 = vsub.f32 %v1065, %v1069
          %v1074 = vsub.f32 %v1066, %v1070
          %v1075 = vsub.f32 %v1067, %v1071
          %v1076 = vmax.f32 %v1072, 0.0
          %v1077 = vmax.f32 %v1073, 0.0
          %v1078 = vmax.f32 %v1074, 0.0
          %v1079 = vmax.f32 %v1075, 0.0
          %v1080 = vadd.f32 %v1076, 1e-05
          %v1081 = vadd.f32 %v1077, 1e-05
          %v1082 = vadd.f32 %v1078, 1e-05
          %v1083 = vadd.f32 %v1079, 1e-05
          %v1084 = vrsqrt.pop %v1080
          %v1085 = vrsqrt.pop %v1081
          %v1086 = vrsqrt.pop %v1082
          %v1087 = vrsqrt.pop %v1083
          %v1088 = vmul.f32 %v1060, %v1084
          %v1089 = vmul.f32 %v1061, %v1085
          %v1090 = vmul.f32 %v1062, %v1086
          %v1091 = vmul.f32 %v1063, %v1087
          %v1096 = vcombine.low %v1088, %v1089
          %v1097 = vcombine.low %v1090, %v1091
          %v1099 = vunpack.c.l.s4 1966171168
          %v1100 = vunpack.c.0.s8 %v1099
          %v1101 = vlaneseq
          %v1102 = vshrl.u32 %v1101, 7
          %v1103 = vsub.s32 %v1100, %v1102
          %v1104 = vrot.slane %v1096, %v1103
          %v1106 = vunpack.c.l.s4 1966171168
          %v1107 = vunpack.c.0.s8 %v1106
          %v1108 = vlaneseq
          %v1109 = vshrl.u32 %v1108, 7
          %v1110 = vsub.s32 %v1107, %v1109
          %v1111 = vrot.slane %v1097, %v1110
          %v1112 = vcombine.low %v1104, %v1111
          %v1114 = vunpack.c.l.s4 1966171168
          %v1115 = vunpack.c.0.s8 %v1114
          %v1116 = vlaneseq
          %v1117 = vshrl.u32 %v1116, 7
          %v1118 = vsub.s32 %v1115, %v1117
          %v1119 = vrot.slane %v1112, %v1118
          %v1121 = vsub.f32 %v995, %v1119
          %v1122 = vmul.f32 %v944, %v1084
          %v1123 = vmul.f32 %v946, %v1085
          %v1124 = vmul.f32 %v987, %v1086
          %v1125 = vmul.f32 %v989, %v1087
          %v1126 = vmul.f32 %v948, %v1084
          %v1127 = vmul.f32 %v950, %v1085
          %v1128 = vmul.f32 %v991, %v1086
          %v1129 = vmul.f32 %v993, %v1087
          %v1131 = vlaneseq
          %v1132 = vshrl.u32 %v1131, 7
          %v1133 = vsub.s32 0, %v1132
          %v1134 = vrot.slane %v1121, %v1133
          %v1135 = vlaneseq
          %v1136 = vshrl.u32 %v1135, 7
          %v1137 = vsub.s32 1, %v1136
          %v1138 = vrot.slane %v1121, %v1137
          %v1139 = vlaneseq
          %v1140 = vshrl.u32 %v1139, 7
          %v1141 = vsub.s32 2, %v1140
          %v1142 = vrot.slane %v1121, %v1141
          %v1143 = vlaneseq
          %v1144 = vshrl.u32 %v1143, 7
          %v1145 = vsub.s32 3, %v1144
          %v1146 = vrot.slane %v1121, %v1145
          %v1151 = vadd.f32 %v1122, %v1134
          %v1152 = vadd.f32 %v1123, %v1138
          %v1153 = vadd.f32 %v1124, %v1142
          %v1154 = vadd.f32 %v1125, %v1146
          %v1155 = vadd.f32 %v1126, %v1134
          %v1156 = vadd.f32 %v1127, %v1138
          %v1157 = vadd.f32 %v1128, %v1142
          %v1158 = vadd.f32 %v1129, %v1146
          %v1159 = vmul.f32 %v1151, %v1151
          %v1160 = vmul.f32 %v1152, %v1152
          %v1161 = vmul.f32 %v1153, %v1153
          %v1162 = vmul.f32 %v1154, %v1154
          %v1163 = vmul.f32 %v1155, %v1155
          %v1164 = vmul.f32 %v1156, %v1156
          %v1165 = vmul.f32 %v1157, %v1157
          %v1166 = vmul.f32 %v1158, %v1158
          %v1167 = vadd.f32 %v1159, %v1160
          %v1168 = vadd.f32 %v1167, %v1161
          %v1169 = vadd.f32 %v1168, %v1162
          %1170 = vadd.xlane.f32.xlu0 %v1169
          %v1171 = vpop.xlane.xlu0 %1170
          %v1172 = vadd.f32 %v1163, %v1164
          %v1173 = vadd.f32 %v1172, %v1165
          %v1174 = vadd.f32 %v1173, %v1166
          %1175 = vadd.xlane.f32.xlu0 %v1174
          %v1176 = vpop.xlane.xlu0 %1175
          %v1177 = vmax.f32 %v1171, 1e-24
          %v1178 = vmax.f32 %v1176, 1e-24
          %v1179 = vrsqrt.pop %v1177
          %v1180 = vrsqrt.pop %v1178
          %v1181 = vmul.f32 %v1151, %v1179
          %v1182 = vmul.f32 %v1152, %v1179
          %v1183 = vmul.f32 %v1153, %v1179
          %v1184 = vmul.f32 %v1154, %v1179
          %v1185 = vmul.f32 %v1155, %v1180
          %v1186 = vmul.f32 %v1156, %v1180
          %v1187 = vmul.f32 %v1157, %v1180
          %v1188 = vmul.f32 %v1158, %v1180
          %1189 = vst [vmem:[#allocation12] sm:$0xff] %v1181
          %1190 = vst [vmem:[#allocation12 + $0x8] sm:$0xff] %v1182
          %1191 = vst [vmem:[#allocation12 + $0x10] sm:$0xff] %v1183
          %1192 = vst [vmem:[#allocation12 + $0x18] sm:$0xff] %v1184
          %1193 = vst [vmem:[#allocation12 + $0x20] sm:$0xff] %v1185
          %1194 = vst [vmem:[#allocation12 + $0x28] sm:$0xff] %v1186
          %1195 = vst [vmem:[#allocation12 + $0x30] sm:$0xff] %v1187
          %1196 = vst [vmem:[#allocation12 + $0x38] sm:$0xff] %v1188
        $region72: #{tpu_custom_call.1} parent=47 // pred_fallthru
          _
        // Predicated region
        $region73: #{tpu_custom_call.1} parent=47 // pred_check
          %p1197 = pneg %p196
        $region74: #{tpu_custom_call.1} parent=47 // pred_check_branch
          %1199 = sbr.rel (%p1197) target = $region76
        $region75: #{tpu_custom_call.1} parent=47 // pred_region
          %s1201 = ssub.s32 1024, 1024
          %1202 = vsyncadd [#allocation6], %s1201
          %s1203 = sshll.u32 [#allocation12], 4
          %s1204 = int_to_ptr.vmem [resolvable:$true] %s1203
          %1209 = dma.vmem_to_hbm [thread:$0]  %s1204, 1024, %s7, [#allocation6], 512, 512, 32
        $region76: #{tpu_custom_call.1} parent=47 // pred_fallthru
          _
        // Predicated region
        $region77: #{tpu_custom_call.1} parent=47 // pred_check
          %p1210 = pneg %p196
        $region78: #{tpu_custom_call.1} parent=47 // pred_check_branch
          %1212 = sbr.rel (%p1210) target = $region80
        $region79: #{tpu_custom_call.1} parent=47 // pred_region
          %1213 = dma.done [#allocation6], 1024
        $region80: #{tpu_custom_call.1} parent=47 // pred_fallthru
          _
      $region48: #{tpu_custom_call.1} parent=5 // pred_fallthru
        _
      %p1214 = scmp.le.s32.totalorder 2, %s21
      // Predicated region
      $region81: #{tpu_custom_call.1} parent=5 // pred_check
        %p1215 = pneg %p1214
      $region82: #{tpu_custom_call.1} parent=5 // pred_check_branch
        %1217 = sbr.rel (%p1215) target = $region84
      $region83: #{tpu_custom_call.1} parent=5 // pred_region
        %s1218 = ssub.s32 %s21, 2
      $region84: #{tpu_custom_call.1} parent=5 // pred_fallthru
        _
    $region6: #{tpu_custom_call.1} parent=1 // loop_footer
      %s25 = sadd.s32 1, %s21
    $region7: #{tpu_custom_call.1} parent=1 // loop_footer_branch
      %20 = sbr.rel target = $region3
    $region8: #{tpu_custom_call.1} parent=1 // loop_exit
      _
    %1219 = vsyncpa [#allocation5], 1
    %s1220 = scalar_lea.sflag [#allocation5], 1
    %1221 = vsyncpa %s1220, 1
    %1222 = vsyncpa [#allocation8], 1
    %s1223 = scalar_lea.sflag [#allocation8], 1
    %1224 = vsyncpa %s1223, 1
    %1225 = vsyncpa [#allocation11], 1
    %1226 = vsyncpa [#allocation6], 1
    %s1227 = scalar_lea.sflag [#allocation6], 1
    %1228 = vsyncpa %s1227, 1

</llo_original>
